<compile_context>
chip_gen: v7x
topology: tpu7x:2x2x1
jax: 0.10.0
libtpu: 0.0.40
codegen_flags: <defaults>
</compile_context>

<pallas_src>
import functools

import jax
import jax.numpy as jnp
from jax.experimental import pallas as pl
from jax.experimental.pallas import tpu as pltpu

_TARGET_BLOCK_BYTES = 4 << 20      # ~4 MiB blocks: big DMAs on all generations
_MIN_KERNEL_BYTES = 512 << 10      # below this, fused XLA elementwise wins
_DELTA_EPS = 1e-8                  # zero-range channel guard


# ----------------------------- kernels --------------------------------------


def _fq_sym_kernel(x_ref, inv_ref, delta_ref, o_ref, *, qmin, qmax):
    x = x_ref[...].astype(jnp.float32)          # (br, bc)
    q = jnp.clip(jnp.round(x * inv_ref[...]), qmin, qmax)
    o_ref[...] = (delta_ref[...] * q).astype(o_ref.dtype)


def _fq_asym_kernel(x_ref, inv_ref, delta_ref, zp_ref, o_ref, *, qmin, qmax):
    x = x_ref[...].astype(jnp.float32)
    zp = zp_ref[...]
    q = jnp.clip(jnp.round((x - zp) * inv_ref[...]), qmin, qmax)
    o_ref[...] = (delta_ref[...] * q + zp).astype(o_ref.dtype)


# ----------------------------- quant math (shared) --------------------------


def _quant_params(min_range, max_range, n_bits, sign, sym):
    """Per-channel delta / inv_delta / zero-point (all float32 vectors)."""
    mn = min_range.astype(jnp.float32)
    mx = max_range.astype(jnp.float32)
    if sym:
        max_abs = jnp.maximum(jnp.abs(mn), jnp.abs(mx))
        delta = max_abs / float(2 ** (n_bits - int(sign)))
        qmin = float(-(2 ** (n_bits - 1))) if sign else 0.0
        qmax = float(2 ** (n_bits - 1) - 1) if sign else float(2 ** n_bits - 1)
        zp = jnp.zeros_like(delta)
    else:
        delta = (mx - mn) / float(2 ** n_bits - 1)
        qmin, qmax = 0.0, float(2 ** n_bits - 1)
        zp = mn
    delta = jnp.maximum(delta, _DELTA_EPS)      # zero-range -> y == 0 (or zp)
    inv_delta = 1.0 / delta
    return delta, inv_delta, zp, qmin, qmax


def _fake_quant_jnp(x, delta, inv_delta, zp, qmin, qmax, sym):
    """Plain-jnp fake quant (fallback path + test reference). Same math as kernel."""
    xf = x.astype(jnp.float32)
    if sym:
        q = jnp.clip(jnp.round(xf * inv_delta), qmin, qmax)
        y = delta * q
    else:
        q = jnp.clip(jnp.round((xf - zp) * inv_delta), qmin, qmax)
        y = delta * q + zp
    return y.astype(x.dtype)


# ----------------------------- block selection ------------------------------


def _choose_block(num_rows, num_cols, itemsize, target_bytes):
    """Pick (block_rows, block_cols) targeting ~target_bytes per block.

    block_cols is the full width when it fits, otherwise a multiple of 128;
    block_rows is a multiple of the dtype sublane packing (or the full dim).
    """
    sublane = max(8, 32 // itemsize)            # 8 f32, 16 bf16, 32 int8
    row_bytes = num_cols * itemsize
    if sublane * row_bytes <= target_bytes:
        bc = num_cols                           # full width fits
    else:
        bc = ((target_bytes // (sublane * itemsize)) // 128) * 128
        bc = max(128, min(bc, num_cols))
    br_budget = max(1, target_bytes // (bc * itemsize))
    if br_budget >= num_rows:
        return num_rows, bc
    br = max(sublane, (br_budget // sublane) * sublane)
    if br >= num_rows:
        br = num_rows
    return br, bc


# ----------------------------- pallas launcher -------------------------------


def _pallas_fake_quant_2d(x2d, delta_v, inv_v, zp_v, qmin, qmax, sym,
                          channel_on_rows):
    """Fake-quantize a lane-dense 2-D slab. Channel axis is rows or lanes."""
    rows, cols = x2d.shape
    itemsize = jnp.dtype(x2d.dtype).itemsize
    br, bc = _choose_block(rows, cols, itemsize, _TARGET_BLOCK_BYTES)
    grid = (pl.cdiv(rows, br), pl.cdiv(cols, bc))

    x_spec = pl.BlockSpec((br, bc), lambda i, j: (i, j))
    if channel_on_rows:
        vshape = (rows, 1)
        # block index constant along inner (j) axis -> fetched once per row block
        vec_spec = pl.BlockSpec((br, 1), lambda i, j: (i, 0))
    else:
        vshape = (1, cols)
        vec_spec = pl.BlockSpec((1, bc), lambda i, j: (0, j))

    delta2d = delta_v.reshape(vshape)
    inv2d = inv_v.reshape(vshape)

    if sym:
        kernel = functools.partial(_fq_sym_kernel, qmin=qmin, qmax=qmax)
        operands = (x2d, inv2d, delta2d)
        in_specs = [x_spec, vec_spec, vec_spec]
    else:
        kernel = functools.partial(_fq_asym_kernel, qmin=qmin, qmax=qmax)
        operands = (x2d, inv2d, delta2d, zp_v.reshape(vshape))
        in_specs = [x_spec, vec_spec, vec_spec, vec_spec]

    block_bytes = br * bc * itemsize
    # in (2 bufs) + out (2 bufs) + tiny vectors + slack
    vmem_limit = int(4 * block_bytes + (4 << 20))

    return pl.pallas_call(
        kernel,
        out_shape=jax.ShapeDtypeStruct((rows, cols), x2d.dtype),
        grid_spec=pltpu.PrefetchScalarGridSpec(
            num_scalar_prefetch=0,
            grid=grid,
            in_specs=in_specs,
            out_specs=x_spec,
        ),
        compiler_params=pltpu.CompilerParams(
            dimension_semantics=("parallel", "arbitrary"),
            vmem_limit_bytes=vmem_limit),
        cost_estimate=pl.CostEstimate(
            flops=4 * x2d.size,
            transcendentals=0,
            bytes_accessed=2 * x2d.size * itemsize),
    )(*operands)


# ----------------------------- public wrapper --------------------------------


def per_channel_fake_quantize(x, min_range, max_range, *, n_bits, sign=True,
                              sym=True, axis=0):
    """Per-channel (along `axis`) fake quantization, forward pass."""
    orig_shape = x.shape
    ndim = x.ndim
    num_ch = x.shape[axis]
    itemsize = jnp.dtype(x.dtype).itemsize

    delta, inv_delta, zp, qmin, qmax = _quant_params(
        min_range.reshape(num_ch), max_range.reshape(num_ch),
        n_bits, sign, sym)

    # Pick a transpose-free 2-D view when possible.
    x2d = None
    channel_on_rows = True
    if axis == 0:
        x2d = x.reshape(num_ch, -1)                  # (C, K), pure reshape
        lane_dim = x2d.shape[1]
    elif axis == ndim - 1:
        x2d = x.reshape(-1, num_ch)                  # (K, C), pure reshape
        channel_on_rows = False
        lane_dim = num_ch

    use_kernel = (x2d is not None
                  and x.size * itemsize >= _MIN_KERNEL_BYTES
                  and lane_dim % 128 == 0)

    if not use_kernel:
        # Small / lane-sparse (K % 128 != 0, typical conv weights) / middle-axis
        # tensors: fused XLA elementwise is at the 2-pass HBM floor already and
        # avoids pallas_call fixed overhead + masked partial stores.
        bshape = [1] * ndim
        bshape[axis] = num_ch
        return _fake_quant_jnp(x, delta.reshape(bshape),
                               inv_delta.reshape(bshape),
                               zp.reshape(bshape), qmin, qmax, sym)

    y2d = _pallas_fake_quant_2d(x2d, delta, inv_delta, zp, qmin, qmax, sym,
                                channel_on_rows)
    return y2d.reshape(orig_shape)


class GradientWeightFakeQuantize:
    """JAX mirror of the PyTorch module (forward pass only)."""
    # TODO(synk): round_ste straight-through gradient (backward) not implemented.

    def __init__(self, gradient_based, weight_shape, n_bits=8, sym=True,
                 ch_out_idx=0):
        del gradient_based  # forward-only: requires_grad has no effect here
        self.n_bits = n_bits
        self.sym = sym
        self.axis = ch_out_idx
        self.x_dims = tuple(d for d in range(len(weight_shape))
                            if d != ch_out_idx)
        zeros_shape = [1] * len(weight_shape)
        zeros_shape[ch_out_idx] = weight_shape[ch_out_idx]
        self.min_range = jnp.zeros(zeros_shape, jnp.float32)
        self.max_range = jnp.zeros(zeros_shape, jnp.float32)
        self.observer_mode = True
        self.sign = True

    def enable_observer(self, observer_mode):
        self.observer_mode = observer_mode

    def __call__(self, x):
        if self.observer_mode:
            # One-shot per-channel range observation (stateful param update).
            self.max_range = jnp.max(x, axis=self.x_dims,
                                     keepdims=True).astype(jnp.float32)
            self.min_range = jnp.min(x, axis=self.x_dims,
                                     keepdims=True).astype(jnp.float32)
            self.observer_mode = False
            return x
        return per_channel_fake_quantize(
            x, self.min_range, self.max_range,
            n_bits=self.n_bits, sign=self.sign, sym=self.sym, axis=self.axis)


# ----------------------------- reference & test ------------------------------


def _reference(x, fq):
    num_ch = x.shape[fq.axis]
    delta, inv_delta, zp, qmin, qmax = _quant_params(
        fq.min_range.reshape(num_ch), fq.max_range.reshape(num_ch),
        fq.n_bits, fq.sign, fq.sym)
    bshape = [1] * x.ndim
    bshape[fq.axis] = num_ch
    return _fake_quant_jnp(x, delta.reshape(bshape), inv_delta.reshape(bshape),
                           zp.reshape(bshape), qmin, qmax, fq.sym)


if __name__ == "__main__":
    key = jax.random.PRNGKey(0)
    k1, k2, k3 = jax.random.split(key, 3)

    # --- 1) conv weight, K = 8*3*3 = 72 (lane-sparse) -> jnp fallback path ---
    w_conv = jax.random.normal(k1, (16, 8, 3, 3), dtype=jnp.float32)
    fq_c = GradientWeightFakeQuantize(False, w_conv.shape, n_bits=8,
                                      sym=True, ch_out_idx=0)
    y0 = fq_c(w_conv)                              # observer call
    assert y0.shape == w_conv.shape and bool(jnp.array_equal(y0, w_conv))
    y_c = jax.block_until_ready(fq_c(w_conv))
    assert jnp.allclose(y_c, _reference(w_conv, fq_c), atol=1e-5)

    # --- 2) linear-like weight (C_out, K) = (256, 1024) -> Pallas kernel ----
    w_lin = jax.random.normal(k2, (256, 1024), dtype=jnp.float32)
    fq_s = GradientWeightFakeQuantize(False, w_lin.shape, n_bits=8,
                                      sym=True, ch_out_idx=0)
    _ = fq_s(w_lin)                                # observer
    y_s = jax.block_until_ready(fq_s(w_lin))       # Pallas, symmetric
    assert y_s.shape == w_lin.shape and y_s.dtype == w_lin.dtype
    assert jnp.allclose(y_s, _reference(w_lin, fq_s), atol=1e-5), "sym mismatch"

    fq_a = GradientWeightFakeQuantize(False, w_lin.shape, n_bits=8,
                                      sym=False, ch_out_idx=0)
    _ = fq_a(w_lin)                                # observer
    y_a = jax.block_until_ready(fq_a(w_lin))       # Pallas, asymmetric
    assert jnp.allclose(y_a, _reference(w_lin, fq_a), atol=1e-5), "asym mismatch"

    # --- 3) channel-last weight (K, C) = (512, 256), ch_out_idx=1 -----------
    #        native layout kept (no moveaxis); channel broadcast along lanes.
    w_last = jax.random.normal(k3, (512, 256), dtype=jnp.float32)
    fq_l = GradientWeightFakeQuantize(False, w_last.shape, n_bits=8,
                                      sym=True, ch_out_idx=1)
    _ = fq_l(w_last)                               # observer
    y_l = jax.block_until_ready(fq_l(w_last))      # Pallas, channel-on-lanes
    assert jnp.allclose(y_l, _reference(w_last, fq_l), atol=1e-5), "axis-last mismatch"

    print("KERNEL_OK")
</pallas_src>

<mosaic_0001>
module attributes {stable_mosaic.version = 11 : i64} {
  func.func @_fq_sym_kernel(%arg0: i32, %arg1: i32, %arg2: memref<256x1024xf32, #tpu.memory_space<vmem>>, %arg3: memref<256x1xf32, #tpu.memory_space<vmem>>, %arg4: memref<256x1xf32, #tpu.memory_space<vmem>>, %arg5: memref<256x1024xf32, #tpu.memory_space<vmem>>) attributes {dimension_semantics = [#tpu.dimension_semantics<parallel>, #tpu.dimension_semantics<arbitrary>], iteration_bounds = array<i64: 1, 1>, scalar_prefetch = 0 : i64, scratch_operands = 0 : i64, tpu.core_type = #tpu.core_type<tc>, window_params = [{transform_indices = @transform_0, window_bounds = array<i64: 256, 1024>}, {transform_indices = @transform_1, window_bounds = array<i64: 256, 1>}, {transform_indices = @transform_2, window_bounds = array<i64: 256, 1>}, {transform_indices = @transform_3, window_bounds = array<i64: 256, 1024>}]} {
    %c0 = arith.constant 0 : index
    %c0_0 = arith.constant 0 : index
    %0 = vector.load %arg2[%c0, %c0_0] : memref<256x1024xf32, #tpu.memory_space<vmem>>, vector<256x1024xf32>
    %c0_1 = arith.constant 0 : index
    %c0_2 = arith.constant 0 : index
    %1 = vector.load %arg3[%c0_1, %c0_2] : memref<256x1xf32, #tpu.memory_space<vmem>>, vector<256x1xf32>
    %2 = vector.broadcast %1 : vector<256x1xf32> to vector<256x1024xf32>
    %3 = arith.mulf %0, %2 : vector<256x1024xf32>
    %4 = math.roundeven %3 : vector<256x1024xf32>
    %cst = arith.constant -1.280000e+02 : f32
    %cst_3 = arith.constant 1.270000e+02 : f32
    %5 = vector.broadcast %cst : f32 to vector<256x1024xf32>
    %6 = arith.maximumf %5, %4 : vector<256x1024xf32>
    %7 = vector.broadcast %cst_3 : f32 to vector<256x1024xf32>
    %8 = arith.minimumf %7, %6 : vector<256x1024xf32>
    %c0_4 = arith.constant 0 : index
    %c0_5 = arith.constant 0 : index
    %9 = vector.load %arg4[%c0_4, %c0_5] : memref<256x1xf32, #tpu.memory_space<vmem>>, vector<256x1xf32>
    %10 = vector.broadcast %9 : vector<256x1xf32> to vector<256x1024xf32>
    %11 = arith.mulf %10, %8 : vector<256x1024xf32>
    %c0_6 = arith.constant 0 : index
    %c0_7 = arith.constant 0 : index
    %12 = vector.load %arg5[%c0_6, %c0_7] : memref<256x1024xf32, #tpu.memory_space<vmem>>, vector<256x1024xf32>
    tpu.vector_store %arg5[%c0_6, %c0_7], %11 {strides = array<i32>} : memref<256x1024xf32, #tpu.memory_space<vmem>>, vector<256x1024xf32>,
    return
  }
  func.func @transform_0(%arg0: i32, %arg1: i32) -> (i32, i32) {
    %c0_i32 = arith.constant 0 : i32
    return %arg0, %arg1 : i32, i32
  }
  func.func @transform_1(%arg0: i32, %arg1: i32) -> (i32, i32) {
    %c0_i32 = arith.constant 0 : i32
    %c0_i32_0 = arith.constant 0 : i32
    return %arg0, %c0_i32 : i32, i32
  }
  func.func @transform_2(%arg0: i32, %arg1: i32) -> (i32, i32) {
    %c0_i32 = arith.constant 0 : i32
    %c0_i32_0 = arith.constant 0 : i32
    return %arg0, %c0_i32 : i32, i32
  }
  func.func @transform_3(%arg0: i32, %arg1: i32) -> (i32, i32) {
    %c0_i32 = arith.constant 0 : i32
    return %arg0, %arg1 : i32, i32
  }
}

</mosaic_0001>

<llo_original>
// kernel: tpu_custom_call.1
$region0: #{tpu_custom_call.1}
  #allocation0 [shape = 'u32[]', space=smem, size = 0x4, offset = 0x4, fixed_abs, tag = 'smem constant byte address 0x4 - core index']
  #allocation1 [shape = 'u32[144,128]{1,0:T(1,128)}', space=vmem, size = 0x12000, scoped, tag = 'internal scratch']
  %s0 = inlined_call_operand.hbm [shape: f32[256,1024], index: 0, kind: input, shape index: {}]
  %s1 = inlined_call_operand.vmem [shape: f32[256,1], index: 1, kind: input, shape index: {}]
  %s2 = inlined_call_operand.vmem [shape: f32[256,1], index: 2, kind: input, shape index: {}]
  %s3 = inlined_call_operand.hbm [shape: f32[256,1024], index: 3, kind: output, shape index: {}]
  %s4 = sld [smem:[#allocation0]]
  $region26: #{tpu_custom_call.1} parent=0
    _
  %s6 = ssub.s32 1, %s4
  %s7 = scalar_select 0, %s6, %s4
  $region1: #{tpu_custom_call.1} parent=0
    #allocation2 [shape = 'u8[1048576]{0}', space=vmem, size = 0x100000, scoped, tag = 'input window, operand 0, single buffered']
    #allocation3 [shape = 's32[1]{0}', space=sflag, size = 0x4, scoped, tag = 'scoped memory for tpu_custom_call.1']
    #allocation4 [shape = 's32[1]{0}', space=sflag, size = 0x4, scoped, tag = 'scoped memory for tpu_custom_call.1']
    #allocation5 [shape = 'u8[1048576]{0}', space=vmem, size = 0x100000, scoped, tag = 'output window, operand 0, single buffered']
    %8 = vsyncpa [#allocation3], 0
    %9 = vsyncpa [#allocation4], 0
    // Predicated region
    $region2: #{tpu_custom_call.1} parent=1 // pred_check
      _
    $region3: #{tpu_custom_call.1} parent=1 // pred_check_branch
      %11 = sbr.rel (0) target = $region5
    $region4: #{tpu_custom_call.1} parent=1 // pred_region
      %s13 = ssub.s32 32768, 32768
      %14 = vsyncadd [#allocation3], %s13
      %s15 = sshll.u32 [#allocation2], 4
      %s16 = int_to_ptr.vmem [resolvable:$true] %s15
      %21 = dma.hbm_to_vmem [thread:$0]  %s0, 32768, %s16, [#allocation3], 1024, 1024, 64
    $region5: #{tpu_custom_call.1} parent=1 // pred_fallthru
      _
    // Predicated region
    $region6: #{tpu_custom_call.1} parent=1 // pred_check
      _
    $region7: #{tpu_custom_call.1} parent=1 // pred_check_branch
      %23 = sbr.rel (0) target = $region9
    $region8: #{tpu_custom_call.1} parent=1 // pred_region
      _
    $region9: #{tpu_custom_call.1} parent=1 // pred_fallthru
      _
    // Predicated region
    $region10: #{tpu_custom_call.1} parent=1 // pred_check
      _
    $region11: #{tpu_custom_call.1} parent=1 // pred_check_branch
      %25 = sbr.rel (0) target = $region13
    $region12: #{tpu_custom_call.1} parent=1 // pred_region
      _
    $region13: #{tpu_custom_call.1} parent=1 // pred_fallthru
      _
    // Predicated region
    $region14: #{tpu_custom_call.1} parent=1 // pred_check
      _
    $region15: #{tpu_custom_call.1} parent=1 // pred_check_branch
      %27 = sbr.rel (0) target = $region17
    $region16: #{tpu_custom_call.1} parent=1 // pred_region
      %28 = dma.done [#allocation3], 32768
    $region17: #{tpu_custom_call.1} parent=1 // pred_fallthru
      _
    %v29 = vld [vmem:[#allocation2] sm:$0xff]
    %v30 = vld [vmem:[#allocation2 + $0x8] sm:$0xff]
    %v31 = vld [vmem:[#allocation2 + $0x10] sm:$0xff]
    %v32 = vld [vmem:[#allocation2 + $0x18] sm:$0xff]
    %v33 = vld [vmem:[#allocation2 + $0x20] sm:$0xff]
    %v34 = vld [vmem:[#allocation2 + $0x28] sm:$0xff]
    %v35 = vld [vmem:[#allocation2 + $0x30] sm:$0xff]
    %v36 = vld [vmem:[#allocation2 + $0x38] sm:$0xff]
    %v37 = vld [vmem:[#allocation2 + $0x40] sm:$0xff]
    %v38 = vld [vmem:[#allocation2 + $0x48] sm:$0xff]
    %v39 = vld [vmem:[#allocation2 + $0x50] sm:$0xff]
    %v40 = vld [vmem:[#allocation2 + $0x58] sm:$0xff]
    %v41 = vld [vmem:[#allocation2 + $0x60] sm:$0xff]
    %v42 = vld [vmem:[#allocation2 + $0x68] sm:$0xff]
    %v43 = vld [vmem:[#allocation2 + $0x70] sm:$0xff]
    %v44 = vld [vmem:[#allocation2 + $0x78] sm:$0xff]
    %v45 = vld [vmem:[#allocation2 + $0x80] sm:$0xff]
    %v46 = vld [vmem:[#allocation2 + $0x88] sm:$0xff]
    %v47 = vld [vmem:[#allocation2 + $0x90] sm:$0xff]
    %v48 = vld [vmem:[#allocation2 + $0x98] sm:$0xff]
    %v49 = vld [vmem:[#allocation2 + $0xa0] sm:$0xff]
    %v50 = vld [vmem:[#allocation2 + $0xa8] sm:$0xff]
    %v51 = vld [vmem:[#allocation2 + $0xb0] sm:$0xff]
    %v52 = vld [vmem:[#allocation2 + $0xb8] sm:$0xff]
    %v53 = vld [vmem:[#allocation2 + $0xc0] sm:$0xff]
    %v54 = vld [vmem:[#allocation2 + $0xc8] sm:$0xff]
    %v55 = vld [vmem:[#allocation2 + $0xd0] sm:$0xff]
    %v56 = vld [vmem:[#allocation2 + $0xd8] sm:$0xff]
    %v57 = vld [vmem:[#allocation2 + $0xe0] sm:$0xff]
    %v58 = vld [vmem:[#allocation2 + $0xe8] sm:$0xff]
    %v59 = vld [vmem:[#allocation2 + $0xf0] sm:$0xff]
    %v60 = vld [vmem:[#allocation2 + $0xf8] sm:$0xff]
    %v61 = vld [vmem:[#allocation2 + $0x100] sm:$0xff]
    %v62 = vld [vmem:[#allocation2 + $0x108] sm:$0xff]
    %v63 = vld [vmem:[#allocation2 + $0x110] sm:$0xff]
    %v64 = vld [vmem:[#allocation2 + $0x118] sm:$0xff]
    %v65 = vld [vmem:[#allocation2 + $0x120] sm:$0xff]
    %v66 = vld [vmem:[#allocation2 + $0x128] sm:$0xff]
    %v67 = vld [vmem:[#allocation2 + $0x130] sm:$0xff]
    %v68 = vld [vmem:[#allocation2 + $0x138] sm:$0xff]
    %v69 = vld [vmem:[#allocation2 + $0x140] sm:$0xff]
    %v70 = vld [vmem:[#allocation2 + $0x148] sm:$0xff]
    %v71 = vld [vmem:[#allocation2 + $0x150] sm:$0xff]
    %v72 = vld [vmem:[#allocation2 + $0x158] sm:$0xff]
    %v73 = vld [vmem:[#allocation2 + $0x160] sm:$0xff]
    %v74 = vld [vmem:[#allocation2 + $0x168] sm:$0xff]
    %v75 = vld [vmem:[#allocation2 + $0x170] sm:$0xff]
    %v76 = vld [vmem:[#allocation2 + $0x178] sm:$0xff]
    %v77 = vld [vmem:[#allocation2 + $0x180] sm:$0xff]
    %v78 = vld [vmem:[#allocation2 + $0x188] sm:$0xff]
    %v79 = vld [vmem:[#allocation2 + $0x190] sm:$0xff]
    %v80 = vld [vmem:[#allocation2 + $0x198] sm:$0xff]
    %v81 = vld [vmem:[#allocation2 + $0x1a0] sm:$0xff]
    %v82 = vld [vmem:[#allocation2 + $0x1a8] sm:$0xff]
    %v83 = vld [vmem:[#allocation2 + $0x1b0] sm:$0xff]
    %v84 = vld [vmem:[#allocation2 + $0x1b8] sm:$0xff]
    %v85 = vld [vmem:[#allocation2 + $0x1c0] sm:$0xff]
    %v86 = vld [vmem:[#allocation2 + $0x1c8] sm:$0xff]
    %v87 = vld [vmem:[#allocation2 + $0x1d0] sm:$0xff]
    %v88 = vld [vmem:[#allocation2 + $0x1d8] sm:$0xff]
    %v89 = vld [vmem:[#allocation2 + $0x1e0] sm:$0xff]
    %v90 = vld [vmem:[#allocation2 + $0x1e8] sm:$0xff]
    %v91 = vld [vmem:[#allocation2 + $0x1f0] sm:$0xff]
    %v92 = vld [vmem:[#allocation2 + $0x1f8] sm:$0xff]
    %v93 = vld [vmem:[#allocation2 + $0x200] sm:$0xff]
    %v94 = vld [vmem:[#allocation2 + $0x208] sm:$0xff]
    %v95 = vld [vmem:[#allocation2 + $0x210] sm:$0xff]
    %v96 = vld [vmem:[#allocation2 + $0x218] sm:$0xff]
    %v97 = vld [vmem:[#allocation2 + $0x220] sm:$0xff]
    %v98 = vld [vmem:[#allocation2 + $0x228] sm:$0xff]
    %v99 = vld [vmem:[#allocation2 + $0x230] sm:$0xff]
    %v100 = vld [vmem:[#allocation2 + $0x238] sm:$0xff]
    %v101 = vld [vmem:[#allocation2 + $0x240] sm:$0xff]
    %v102 = vld [vmem:[#allocation2 + $0x248] sm:$0xff]
    %v103 = vld [vmem:[#allocation2 + $0x250] sm:$0xff]
    %v104 = vld [vmem:[#allocation2 + $0x258] sm:$0xff]
    %v105 = vld [vmem:[#allocation2 + $0x260] sm:$0xff]
    %v106 = vld [vmem:[#allocation2 + $0x268] sm:$0xff]
    %v107 = vld [vmem:[#allocation2 + $0x270] sm:$0xff]
    %v108 = vld [vmem:[#allocation2 + $0x278] sm:$0xff]
    %v109 = vld [vmem:[#allocation2 + $0x280] sm:$0xff]
    %v110 = vld [vmem:[#allocation2 + $0x288] sm:$0xff]
    %v111 = vld [vmem:[#allocation2 + $0x290] sm:$0xff]
    %v112 = vld [vmem:[#allocation2 + $0x298] sm:$0xff]
    %v113 = vld [vmem:[#allocation2 + $0x2a0] sm:$0xff]
    %v114 = vld [vmem:[#allocation2 + $0x2a8] sm:$0xff]
    %v115 = vld [vmem:[#allocation2 + $0x2b0] sm:$0xff]
    %v116 = vld [vmem:[#allocation2 + $0x2b8] sm:$0xff]
    %v117 = vld [vmem:[#allocation2 + $0x2c0] sm:$0xff]
    %v118 = vld [vmem:[#allocation2 + $0x2c8] sm:$0xff]
    %v119 = vld [vmem:[#allocation2 + $0x2d0] sm:$0xff]
    %v120 = vld [vmem:[#allocation2 + $0x2d8] sm:$0xff]
    %v121 = vld [vmem:[#allocation2 + $0x2e0] sm:$0xff]
    %v122 = vld [vmem:[#allocation2 + $0x2e8] sm:$0xff]
    %v123 = vld [vmem:[#allocation2 + $0x2f0] sm:$0xff]
    %v124 = vld [vmem:[#allocation2 + $0x2f8] sm:$0xff]
    %v125 = vld [vmem:[#allocation2 + $0x300] sm:$0xff]
    %v126 = vld [vmem:[#allocation2 + $0x308] sm:$0xff]
    %v127 = vld [vmem:[#allocation2 + $0x310] sm:$0xff]
    %v128 = vld [vmem:[#allocation2 + $0x318] sm:$0xff]
    %v129 = vld [vmem:[#allocation2 + $0x320] sm:$0xff]
    %v130 = vld [vmem:[#allocation2 + $0x328] sm:$0xff]
    %v131 = vld [vmem:[#allocation2 + $0x330] sm:$0xff]
    %v132 = vld [vmem:[#allocation2 + $0x338] sm:$0xff]
    %v133 = vld [vmem:[#allocation2 + $0x340] sm:$0xff]
    %v134 = vld [vmem:[#allocation2 + $0x348] sm:$0xff]
    %v135 = vld [vmem:[#allocation2 + $0x350] sm:$0xff]
    %v136 = vld [vmem:[#allocation2 + $0x358] sm:$0xff]
    %v137 = vld [vmem:[#allocation2 + $0x360] sm:$0xff]
    %v138 = vld [vmem:[#allocation2 + $0x368] sm:$0xff]
    %v139 = vld [vmem:[#allocation2 + $0x370] sm:$0xff]
    %v140 = vld [vmem:[#allocation2 + $0x378] sm:$0xff]
    %v141 = vld [vmem:[#allocation2 + $0x380] sm:$0xff]
    %v142 = vld [vmem:[#allocation2 + $0x388] sm:$0xff]
    %v143 = vld [vmem:[#allocation2 + $0x390] sm:$0xff]
    %v144 = vld [vmem:[#allocation2 + $0x398] sm:$0xff]
    %v145 = vld [vmem:[#allocation2 + $0x3a0] sm:$0xff]
    %v146 = vld [vmem:[#allocation2 + $0x3a8] sm:$0xff]
    %v147 = vld [vmem:[#allocation2 + $0x3b0] sm:$0xff]
    %v148 = vld [vmem:[#allocation2 + $0x3b8] sm:$0xff]
    %v149 = vld [vmem:[#allocation2 + $0x3c0] sm:$0xff]
    %v150 = vld [vmem:[#allocation2 + $0x3c8] sm:$0xff]
    %v151 = vld [vmem:[#allocation2 + $0x3d0] sm:$0xff]
    %v152 = vld [vmem:[#allocation2 + $0x3d8] sm:$0xff]
    %v153 = vld [vmem:[#allocation2 + $0x3e0] sm:$0xff]
    %v154 = vld [vmem:[#allocation2 + $0x3e8] sm:$0xff]
    %v155 = vld [vmem:[#allocation2 + $0x3f0] sm:$0xff]
    %v156 = vld [vmem:[#allocation2 + $0x3f8] sm:$0xff]
    %v157 = vld [vmem:[#allocation2 + $0x400] sm:$0xff]
    %v158 = vld [vmem:[#allocation2 + $0x408] sm:$0xff]
    %v159 = vld [vmem:[#allocation2 + $0x410] sm:$0xff]
    %v160 = vld [vmem:[#allocation2 + $0x418] sm:$0xff]
    %v161 = vld [vmem:[#allocation2 + $0x420] sm:$0xff]
    %v162 = vld [vmem:[#allocation2 + $0x428] sm:$0xff]
    %v163 = vld [vmem:[#allocation2 + $0x430] sm:$0xff]
    %v164 = vld [vmem:[#allocation2 + $0x438] sm:$0xff]
    %v165 = vld [vmem:[#allocation2 + $0x440] sm:$0xff]
    %v166 = vld [vmem:[#allocation2 + $0x448] sm:$0xff]
    %v167 = vld [vmem:[#allocation2 + $0x450] sm:$0xff]
    %v168 = vld [vmem:[#allocation2 + $0x458] sm:$0xff]
    %v169 = vld [vmem:[#allocation2 + $0x460] sm:$0xff]
    %v170 = vld [vmem:[#allocation2 + $0x468] sm:$0xff]
    %v171 = vld [vmem:[#allocation2 + $0x470] sm:$0xff]
    %v172 = vld [vmem:[#allocation2 + $0x478] sm:$0xff]
    %v173 = vld [vmem:[#allocation2 + $0x480] sm:$0xff]
    %v174 = vld [vmem:[#allocation2 + $0x488] sm:$0xff]
    %v175 = vld [vmem:[#allocation2 + $0x490] sm:$0xff]
    %v176 = vld [vmem:[#allocation2 + $0x498] sm:$0xff]
    %v177 = vld [vmem:[#allocation2 + $0x4a0] sm:$0xff]
    %v178 = vld [vmem:[#allocation2 + $0x4a8] sm:$0xff]
    %v179 = vld [vmem:[#allocation2 + $0x4b0] sm:$0xff]
    %v180 = vld [vmem:[#allocation2 + $0x4b8] sm:$0xff]
    %v181 = vld [vmem:[#allocation2 + $0x4c0] sm:$0xff]
    %v182 = vld [vmem:[#allocation2 + $0x4c8] sm:$0xff]
    %v183 = vld [vmem:[#allocation2 + $0x4d0] sm:$0xff]
    %v184 = vld [vmem:[#allocation2 + $0x4d8] sm:$0xff]
    %v185 = vld [vmem:[#allocation2 + $0x4e0] sm:$0xff]
    %v186 = vld [vmem:[#allocation2 + $0x4e8] sm:$0xff]
    %v187 = vld [vmem:[#allocation2 + $0x4f0] sm:$0xff]
    %v188 = vld [vmem:[#allocation2 + $0x4f8] sm:$0xff]
    %v189 = vld [vmem:[#allocation2 + $0x500] sm:$0xff]
    %v190 = vld [vmem:[#allocation2 + $0x508] sm:$0xff]
    %v191 = vld [vmem:[#allocation2 + $0x510] sm:$0xff]
    %v192 = vld [vmem:[#allocation2 + $0x518] sm:$0xff]
    %v193 = vld [vmem:[#allocation2 + $0x520] sm:$0xff]
    %v194 = vld [vmem:[#allocation2 + $0x528] sm:$0xff]
    %v195 = vld [vmem:[#allocation2 + $0x530] sm:$0xff]
    %v196 = vld [vmem:[#allocation2 + $0x538] sm:$0xff]
    %v197 = vld [vmem:[#allocation2 + $0x540] sm:$0xff]
    %v198 = vld [vmem:[#allocation2 + $0x548] sm:$0xff]
    %v199 = vld [vmem:[#allocation2 + $0x550] sm:$0xff]
    %v200 = vld [vmem:[#allocation2 + $0x558] sm:$0xff]
    %v201 = vld [vmem:[#allocation2 + $0x560] sm:$0xff]
    %v202 = vld [vmem:[#allocation2 + $0x568] sm:$0xff]
    %v203 = vld [vmem:[#allocation2 + $0x570] sm:$0xff]
    %v204 = vld [vmem:[#allocation2 + $0x578] sm:$0xff]
    %v205 = vld [vmem:[#allocation2 + $0x580] sm:$0xff]
    %v206 = vld [vmem:[#allocation2 + $0x588] sm:$0xff]
    %v207 = vld [vmem:[#allocation2 + $0x590] sm:$0xff]
    %v208 = vld [vmem:[#allocation2 + $0x598] sm:$0xff]
    %v209 = vld [vmem:[#allocation2 + $0x5a0] sm:$0xff]
    %v210 = vld [vmem:[#allocation2 + $0x5a8] sm:$0xff]
    %v211 = vld [vmem:[#allocation2 + $0x5b0] sm:$0xff]
    %v212 = vld [vmem:[#allocation2 + $0x5b8] sm:$0xff]
    %v213 = vld [vmem:[#allocation2 + $0x5c0] sm:$0xff]
    %v214 = vld [vmem:[#allocation2 + $0x5c8] sm:$0xff]
    %v215 = vld [vmem:[#allocation2 + $0x5d0] sm:$0xff]
    %v216 = vld [vmem:[#allocation2 + $0x5d8] sm:$0xff]
    %v217 = vld [vmem:[#allocation2 + $0x5e0] sm:$0xff]
    %v218 = vld [vmem:[#allocation2 + $0x5e8] sm:$0xff]
    %v219 = vld [vmem:[#allocation2 + $0x5f0] sm:$0xff]
    %v220 = vld [vmem:[#allocation2 + $0x5f8] sm:$0xff]
    %v221 = vld [vmem:[#allocation2 + $0x600] sm:$0xff]
    %v222 = vld [vmem:[#allocation2 + $0x608] sm:$0xff]
    %v223 = vld [vmem:[#allocation2 + $0x610] sm:$0xff]
    %v224 = vld [vmem:[#allocation2 + $0x618] sm:$0xff]
    %v225 = vld [vmem:[#allocation2 + $0x620] sm:$0xff]
    %v226 = vld [vmem:[#allocation2 + $0x628] sm:$0xff]
    %v227 = vld [vmem:[#allocation2 + $0x630] sm:$0xff]
    %v228 = vld [vmem:[#allocation2 + $0x638] sm:$0xff]
    %v229 = vld [vmem:[#allocation2 + $0x640] sm:$0xff]
    %v230 = vld [vmem:[#allocation2 + $0x648] sm:$0xff]
    %v231 = vld [vmem:[#allocation2 + $0x650] sm:$0xff]
    %v232 = vld [vmem:[#allocation2 + $0x658] sm:$0xff]
    %v233 = vld [vmem:[#allocation2 + $0x660] sm:$0xff]
    %v234 = vld [vmem:[#allocation2 + $0x668] sm:$0xff]
    %v235 = vld [vmem:[#allocation2 + $0x670] sm:$0xff]
    %v236 = vld [vmem:[#allocation2 + $0x678] sm:$0xff]
    %v237 = vld [vmem:[#allocation2 + $0x680] sm:$0xff]
    %v238 = vld [vmem:[#allocation2 + $0x688] sm:$0xff]
    %v239 = vld [vmem:[#allocation2 + $0x690] sm:$0xff]
    %v240 = vld [vmem:[#allocation2 + $0x698] sm:$0xff]
    %v241 = vld [vmem:[#allocation2 + $0x6a0] sm:$0xff]
    %v242 = vld [vmem:[#allocation2 + $0x6a8] sm:$0xff]
    %v243 = vld [vmem:[#allocation2 + $0x6b0] sm:$0xff]
    %v244 = vld [vmem:[#allocation2 + $0x6b8] sm:$0xff]
    %v245 = vld [vmem:[#allocation2 + $0x6c0] sm:$0xff]
    %v246 = vld [vmem:[#allocation2 + $0x6c8] sm:$0xff]
    %v247 = vld [vmem:[#allocation2 + $0x6d0] sm:$0xff]
    %v248 = vld [vmem:[#allocation2 + $0x6d8] sm:$0xff]
    %v249 = vld [vmem:[#allocation2 + $0x6e0] sm:$0xff]
    %v250 = vld [vmem:[#allocation2 + $0x6e8] sm:$0xff]
    %v251 = vld [vmem:[#allocation2 + $0x6f0] sm:$0xff]
    %v252 = vld [vmem:[#allocation2 + $0x6f8] sm:$0xff]
    %v253 = vld [vmem:[#allocation2 + $0x700] sm:$0xff]
    %v254 = vld [vmem:[#allocation2 + $0x708] sm:$0xff]
    %v255 = vld [vmem:[#allocation2 + $0x710] sm:$0xff]
    %v256 = vld [vmem:[#allocation2 + $0x718] sm:$0xff]
    %v257 = vld [vmem:[#allocation2 + $0x720] sm:$0xff]
    %v258 = vld [vmem:[#allocation2 + $0x728] sm:$0xff]
    %v259 = vld [vmem:[#allocation2 + $0x730] sm:$0xff]
    %v260 = vld [vmem:[#allocation2 + $0x738] sm:$0xff]
    %v261 = vld [vmem:[#allocation2 + $0x740] sm:$0xff]
    %v262 = vld [vmem:[#allocation2 + $0x748] sm:$0xff]
    %v263 = vld [vmem:[#allocation2 + $0x750] sm:$0xff]
    %v264 = vld [vmem:[#allocation2 + $0x758] sm:$0xff]
    %v265 = vld [vmem:[#allocation2 + $0x760] sm:$0xff]
    %v266 = vld [vmem:[#allocation2 + $0x768] sm:$0xff]
    %v267 = vld [vmem:[#allocation2 + $0x770] sm:$0xff]
    %v268 = vld [vmem:[#allocation2 + $0x778] sm:$0xff]
    %v269 = vld [vmem:[#allocation2 + $0x780] sm:$0xff]
    %v270 = vld [vmem:[#allocation2 + $0x788] sm:$0xff]
    %v271 = vld [vmem:[#allocation2 + $0x790] sm:$0xff]
    %v272 = vld [vmem:[#allocation2 + $0x798] sm:$0xff]
    %v273 = vld [vmem:[#allocation2 + $0x7a0] sm:$0xff]
    %v274 = vld [vmem:[#allocation2 + $0x7a8] sm:$0xff]
    %v275 = vld [vmem:[#allocation2 + $0x7b0] sm:$0xff]
    %v276 = vld [vmem:[#allocation2 + $0x7b8] sm:$0xff]
    %v277 = vld [vmem:[#allocation2 + $0x7c0] sm:$0xff]
    %v278 = vld [vmem:[#allocation2 + $0x7c8] sm:$0xff]
    %v279 = vld [vmem:[#allocation2 + $0x7d0] sm:$0xff]
    %v280 = vld [vmem:[#allocation2 + $0x7d8] sm:$0xff]
    %v281 = vld [vmem:[#allocation2 + $0x7e0] sm:$0xff]
    %v282 = vld [vmem:[#allocation2 + $0x7e8] sm:$0xff]
    %v283 = vld [vmem:[#allocation2 + $0x7f0] sm:$0xff]
    %v284 = vld [vmem:[#allocation2 + $0x7f8] sm:$0xff]
    %v285 = vld [vmem:[%s1] sm:$0xff]
    %v286 = vld [vmem:[%s1 + $0x8] sm:$0xff]
    %v287 = vld [vmem:[%s1 + $0x10] sm:$0xff]
    %v288 = vld [vmem:[%s1 + $0x18] sm:$0xff]
    %v289 = vld [vmem:[%s1 + $0x20] sm:$0xff]
    %v290 = vld [vmem:[%s1 + $0x28] sm:$0xff]
    %v291 = vld [vmem:[%s1 + $0x30] sm:$0xff]
    %v292 = vld [vmem:[%s1 + $0x38] sm:$0xff]
    %v293 = vld [vmem:[%s1 + $0x40] sm:$0xff]
    %v294 = vld [vmem:[%s1 + $0x48] sm:$0xff]
    %v295 = vld [vmem:[%s1 + $0x50] sm:$0xff]
    %v296 = vld [vmem:[%s1 + $0x58] sm:$0xff]
    %v297 = vld [vmem:[%s1 + $0x60] sm:$0xff]
    %v298 = vld [vmem:[%s1 + $0x68] sm:$0xff]
    %v299 = vld [vmem:[%s1 + $0x70] sm:$0xff]
    %v300 = vld [vmem:[%s1 + $0x78] sm:$0xff]
    %v301 = vld [vmem:[%s1 + $0x80] sm:$0xff]
    %v302 = vld [vmem:[%s1 + $0x88] sm:$0xff]
    %v303 = vld [vmem:[%s1 + $0x90] sm:$0xff]
    %v304 = vld [vmem:[%s1 + $0x98] sm:$0xff]
    %v305 = vld [vmem:[%s1 + $0xa0] sm:$0xff]
    %v306 = vld [vmem:[%s1 + $0xa8] sm:$0xff]
    %v307 = vld [vmem:[%s1 + $0xb0] sm:$0xff]
    %v308 = vld [vmem:[%s1 + $0xb8] sm:$0xff]
    %v309 = vld [vmem:[%s1 + $0xc0] sm:$0xff]
    %v310 = vld [vmem:[%s1 + $0xc8] sm:$0xff]
    %v311 = vld [vmem:[%s1 + $0xd0] sm:$0xff]
    %v312 = vld [vmem:[%s1 + $0xd8] sm:$0xff]
    %v313 = vld [vmem:[%s1 + $0xe0] sm:$0xff]
    %v314 = vld [vmem:[%s1 + $0xe8] sm:$0xff]
    %v315 = vld [vmem:[%s1 + $0xf0] sm:$0xff]
    %v316 = vld [vmem:[%s1 + $0xf8] sm:$0xff]
    %318 = vset.pattern.permute.xlu0 0
    %319 = vperm.xlu0 %318, %v285
    %v320 = vpop.permute.xlu0 %319
    %323 = vset.pattern.permute.xlu0 0
    %324 = vperm.xlu0 %323, %v286
    %v325 = vpop.permute.xlu0 %324
    %328 = vset.pattern.permute.xlu0 0
    %329 = vperm.xlu0 %328, %v287
    %v330 = vpop.permute.xlu0 %329
    %333 = vset.pattern.permute.xlu0 0
    %334 = vperm.xlu0 %333, %v288
    %v335 = vpop.permute.xlu0 %334
    %338 = vset.pattern.permute.xlu0 0
    %339 = vperm.xlu0 %338, %v289
    %v340 = vpop.permute.xlu0 %339
    %343 = vset.pattern.permute.xlu0 0
    %344 = vperm.xlu0 %343, %v290
    %v345 = vpop.permute.xlu0 %344
    %348 = vset.pattern.permute.xlu0 0
    %349 = vperm.xlu0 %348, %v291
    %v350 = vpop.permute.xlu0 %349
    %353 = vset.pattern.permute.xlu0 0
    %354 = vperm.xlu0 %353, %v292
    %v355 = vpop.permute.xlu0 %354
    %358 = vset.pattern.permute.xlu0 0
    %359 = vperm.xlu0 %358, %v293
    %v360 = vpop.permute.xlu0 %359
    %363 = vset.pattern.permute.xlu0 0
    %364 = vperm.xlu0 %363, %v294
    %v365 = vpop.permute.xlu0 %364
    %368 = vset.pattern.permute.xlu0 0
    %369 = vperm.xlu0 %368, %v295
    %v370 = vpop.permute.xlu0 %369
    %373 = vset.pattern.permute.xlu0 0
    %374 = vperm.xlu0 %373, %v296
    %v375 = vpop.permute.xlu0 %374
    %378 = vset.pattern.permute.xlu0 0
    %379 = vperm.xlu0 %378, %v297
    %v380 = vpop.permute.xlu0 %379
    %383 = vset.pattern.permute.xlu0 0
    %384 = vperm.xlu0 %383, %v298
    %v385 = vpop.permute.xlu0 %384
    %388 = vset.pattern.permute.xlu0 0
    %389 = vperm.xlu0 %388, %v299
    %v390 = vpop.permute.xlu0 %389
    %393 = vset.pattern.permute.xlu0 0
    %394 = vperm.xlu0 %393, %v300
    %v395 = vpop.permute.xlu0 %394
    %398 = vset.pattern.permute.xlu0 0
    %399 = vperm.xlu0 %398, %v301
    %v400 = vpop.permute.xlu0 %399
    %403 = vset.pattern.permute.xlu0 0
    %404 = vperm.xlu0 %403, %v302
    %v405 = vpop.permute.xlu0 %404
    %408 = vset.pattern.permute.xlu0 0
    %409 = vperm.xlu0 %408, %v303
    %v410 = vpop.permute.xlu0 %409
    %413 = vset.pattern.permute.xlu0 0
    %414 = vperm.xlu0 %413, %v304
    %v415 = vpop.permute.xlu0 %414
    %418 = vset.pattern.permute.xlu0 0
    %419 = vperm.xlu0 %418, %v305
    %v420 = vpop.permute.xlu0 %419
    %423 = vset.pattern.permute.xlu0 0
    %424 = vperm.xlu0 %423, %v306
    %v425 = vpop.permute.xlu0 %424
    %428 = vset.pattern.permute.xlu0 0
    %429 = vperm.xlu0 %428, %v307
    %v430 = vpop.permute.xlu0 %429
    %433 = vset.pattern.permute.xlu0 0
    %434 = vperm.xlu0 %433, %v308
    %v435 = vpop.permute.xlu0 %434
    %438 = vset.pattern.permute.xlu0 0
    %439 = vperm.xlu0 %438, %v309
    %v440 = vpop.permute.xlu0 %439
    %443 = vset.pattern.permute.xlu0 0
    %444 = vperm.xlu0 %443, %v310
    %v445 = vpop.permute.xlu0 %444
    %448 = vset.pattern.permute.xlu0 0
    %449 = vperm.xlu0 %448, %v311
    %v450 = vpop.permute.xlu0 %449
    %453 = vset.pattern.permute.xlu0 0
    %454 = vperm.xlu0 %453, %v312
    %v455 = vpop.permute.xlu0 %454
    %458 = vset.pattern.permute.xlu0 0
    %459 = vperm.xlu0 %458, %v313
    %v460 = vpop.permute.xlu0 %459
    %463 = vset.pattern.permute.xlu0 0
    %464 = vperm.xlu0 %463, %v314
    %v465 = vpop.permute.xlu0 %464
    %468 = vset.pattern.permute.xlu0 0
    %469 = vperm.xlu0 %468, %v315
    %v470 = vpop.permute.xlu0 %469
    %473 = vset.pattern.permute.xlu0 0
    %474 = vperm.xlu0 %473, %v316
    %v475 = vpop.permute.xlu0 %474
    %v477 = vmul.f32 %v29, %v320
    %v478 = vmul.f32 %v30, %v320
    %v479 = vmul.f32 %v31, %v320
    %v480 = vmul.f32 %v32, %v320
    %v481 = vmul.f32 %v33, %v320
    %v482 = vmul.f32 %v34, %v320
    %v483 = vmul.f32 %v35, %v320
    %v484 = vmul.f32 %v36, %v320
    %v485 = vmul.f32 %v37, %v325
    %v486 = vmul.f32 %v38, %v325
    %v487 = vmul.f32 %v39, %v325
    %v488 = vmul.f32 %v40, %v325
    %v489 = vmul.f32 %v41, %v325
    %v490 = vmul.f32 %v42, %v325
    %v491 = vmul.f32 %v43, %v325
    %v492 = vmul.f32 %v44, %v325
    %v493 = vmul.f32 %v45, %v330
    %v494 = vmul.f32 %v46, %v330
    %v495 = vmul.f32 %v47, %v330
    %v496 = vmul.f32 %v48, %v330
    %v497 = vmul.f32 %v49, %v330
    %v498 = vmul.f32 %v50, %v330
    %v499 = vmul.f32 %v51, %v330
    %v500 = vmul.f32 %v52, %v330
    %v501 = vmul.f32 %v53, %v335
    %v502 = vmul.f32 %v54, %v335
    %v503 = vmul.f32 %v55, %v335
    %v504 = vmul.f32 %v56, %v335
    %v505 = vmul.f32 %v57, %v335
    %v506 = vmul.f32 %v58, %v335
    %v507 = vmul.f32 %v59, %v335
    %v508 = vmul.f32 %v60, %v335
    %v509 = vmul.f32 %v61, %v340
    %v510 = vmul.f32 %v62, %v340
    %v511 = vmul.f32 %v63, %v340
    %v512 = vmul.f32 %v64, %v340
    %v513 = vmul.f32 %v65, %v340
    %v514 = vmul.f32 %v66, %v340
    %v515 = vmul.f32 %v67, %v340
    %v516 = vmul.f32 %v68, %v340
    %v517 = vmul.f32 %v69, %v345
    %v518 = vmul.f32 %v70, %v345
    %v519 = vmul.f32 %v71, %v345
    %v520 = vmul.f32 %v72, %v345
    %v521 = vmul.f32 %v73, %v345
    %v522 = vmul.f32 %v74, %v345
    %v523 = vmul.f32 %v75, %v345
    %v524 = vmul.f32 %v76, %v345
    %v525 = vmul.f32 %v77, %v350
    %v526 = vmul.f32 %v78, %v350
    %v527 = vmul.f32 %v79, %v350
    %v528 = vmul.f32 %v80, %v350
    %v529 = vmul.f32 %v81, %v350
    %v530 = vmul.f32 %v82, %v350
    %v531 = vmul.f32 %v83, %v350
    %v532 = vmul.f32 %v84, %v350
    %v533 = vmul.f32 %v85, %v355
    %v534 = vmul.f32 %v86, %v355
    %v535 = vmul.f32 %v87, %v355
    %v536 = vmul.f32 %v88, %v355
    %v537 = vmul.f32 %v89, %v355
    %v538 = vmul.f32 %v90, %v355
    %v539 = vmul.f32 %v91, %v355
    %v540 = vmul.f32 %v92, %v355
    %v541 = vmul.f32 %v93, %v360
    %v542 = vmul.f32 %v94, %v360
    %v543 = vmul.f32 %v95, %v360
    %v544 = vmul.f32 %v96, %v360
    %v545 = vmul.f32 %v97, %v360
    %v546 = vmul.f32 %v98, %v360
    %v547 = vmul.f32 %v99, %v360
    %v548 = vmul.f32 %v100, %v360
    %v549 = vmul.f32 %v101, %v365
    %v550 = vmul.f32 %v102, %v365
    %v551 = vmul.f32 %v103, %v365
    %v552 = vmul.f32 %v104, %v365
    %v553 = vmul.f32 %v105, %v365
    %v554 = vmul.f32 %v106, %v365
    %v555 = vmul.f32 %v107, %v365
    %v556 = vmul.f32 %v108, %v365
    %v557 = vmul.f32 %v109, %v370
    %v558 = vmul.f32 %v110, %v370
    %v559 = vmul.f32 %v111, %v370
    %v560 = vmul.f32 %v112, %v370
    %v561 = vmul.f32 %v113, %v370
    %v562 = vmul.f32 %v114, %v370
    %v563 = vmul.f32 %v115, %v370
    %v564 = vmul.f32 %v116, %v370
    %v565 = vmul.f32 %v117, %v375
    %v566 = vmul.f32 %v118, %v375
    %v567 = vmul.f32 %v119, %v375
    %v568 = vmul.f32 %v120, %v375
    %v569 = vmul.f32 %v121, %v375
    %v570 = vmul.f32 %v122, %v375
    %v571 = vmul.f32 %v123, %v375
    %v572 = vmul.f32 %v124, %v375
    %v573 = vmul.f32 %v125, %v380
    %v574 = vmul.f32 %v126, %v380
    %v575 = vmul.f32 %v127, %v380
    %v576 = vmul.f32 %v128, %v380
    %v577 = vmul.f32 %v129, %v380
    %v578 = vmul.f32 %v130, %v380
    %v579 = vmul.f32 %v131, %v380
    %v580 = vmul.f32 %v132, %v380
    %v581 = vmul.f32 %v133, %v385
    %v582 = vmul.f32 %v134, %v385
    %v583 = vmul.f32 %v135, %v385
    %v584 = vmul.f32 %v136, %v385
    %v585 = vmul.f32 %v137, %v385
    %v586 = vmul.f32 %v138, %v385
    %v587 = vmul.f32 %v139, %v385
    %v588 = vmul.f32 %v140, %v385
    %v589 = vmul.f32 %v141, %v390
    %v590 = vmul.f32 %v142, %v390
    %v591 = vmul.f32 %v143, %v390
    %v592 = vmul.f32 %v144, %v390
    %v593 = vmul.f32 %v145, %v390
    %v594 = vmul.f32 %v146, %v390
    %v595 = vmul.f32 %v147, %v390
    %v596 = vmul.f32 %v148, %v390
    %v597 = vmul.f32 %v149, %v395
    %v598 = vmul.f32 %v150, %v395
    %v599 = vmul.f32 %v151, %v395
    %v600 = vmul.f32 %v152, %v395
    %v601 = vmul.f32 %v153, %v395
    %v602 = vmul.f32 %v154, %v395
    %v603 = vmul.f32 %v155, %v395
    %v604 = vmul.f32 %v156, %v395
    %v605 = vmul.f32 %v157, %v400
    %v606 = vmul.f32 %v158, %v400
    %v607 = vmul.f32 %v159, %v400
    %v608 = vmul.f32 %v160, %v400
    %v609 = vmul.f32 %v161, %v400
    %v610 = vmul.f32 %v162, %v400
    %v611 = vmul.f32 %v163, %v400
    %v612 = vmul.f32 %v164, %v400
    %v613 = vmul.f32 %v165, %v405
    %v614 = vmul.f32 %v166, %v405
    %v615 = vmul.f32 %v167, %v405
    %v616 = vmul.f32 %v168, %v405
    %v617 = vmul.f32 %v169, %v405
    %v618 = vmul.f32 %v170, %v405
    %v619 = vmul.f32 %v171, %v405
    %v620 = vmul.f32 %v172, %v405
    %v621 = vmul.f32 %v173, %v410
    %v622 = vmul.f32 %v174, %v410
    %v623 = vmul.f32 %v175, %v410
    %v624 = vmul.f32 %v176, %v410
    %v625 = vmul.f32 %v177, %v410
    %v626 = vmul.f32 %v178, %v410
    %v627 = vmul.f32 %v179, %v410
    %v628 = vmul.f32 %v180, %v410
    %v629 = vmul.f32 %v181, %v415
    %v630 = vmul.f32 %v182, %v415
    %v631 = vmul.f32 %v183, %v415
    %v632 = vmul.f32 %v184, %v415
    %v633 = vmul.f32 %v185, %v415
    %v634 = vmul.f32 %v186, %v415
    %v635 = vmul.f32 %v187, %v415
    %v636 = vmul.f32 %v188, %v415
    %v637 = vmul.f32 %v189, %v420
    %v638 = vmul.f32 %v190, %v420
    %v639 = vmul.f32 %v191, %v420
    %v640 = vmul.f32 %v192, %v420
    %v641 = vmul.f32 %v193, %v420
    %v642 = vmul.f32 %v194, %v420
    %v643 = vmul.f32 %v195, %v420
    %v644 = vmul.f32 %v196, %v420
    %v645 = vmul.f32 %v197, %v425
    %v646 = vmul.f32 %v198, %v425
    %v647 = vmul.f32 %v199, %v425
    %v648 = vmul.f32 %v200, %v425
    %v649 = vmul.f32 %v201, %v425
    %v650 = vmul.f32 %v202, %v425
    %v651 = vmul.f32 %v203, %v425
    %v652 = vmul.f32 %v204, %v425
    %v653 = vmul.f32 %v205, %v430
    %v654 = vmul.f32 %v206, %v430
    %v655 = vmul.f32 %v207, %v430
    %v656 = vmul.f32 %v208, %v430
    %v657 = vmul.f32 %v209, %v430
    %v658 = vmul.f32 %v210, %v430
    %v659 = vmul.f32 %v211, %v430
    %v660 = vmul.f32 %v212, %v430
    %v661 = vmul.f32 %v213, %v435
    %v662 = vmul.f32 %v214, %v435
    %v663 = vmul.f32 %v215, %v435
    %v664 = vmul.f32 %v216, %v435
    %v665 = vmul.f32 %v217, %v435
    %v666 = vmul.f32 %v218, %v435
    %v667 = vmul.f32 %v219, %v435
    %v668 = vmul.f32 %v220, %v435
    %v669 = vmul.f32 %v221, %v440
    %v670 = vmul.f32 %v222, %v440
    %v671 = vmul.f32 %v223, %v440
    %v672 = vmul.f32 %v224, %v440
    %v673 = vmul.f32 %v225, %v440
    %v674 = vmul.f32 %v226, %v440
    %v675 = vmul.f32 %v227, %v440
    %v676 = vmul.f32 %v228, %v440
    %v677 = vmul.f32 %v229, %v445
    %v678 = vmul.f32 %v230, %v445
    %v679 = vmul.f32 %v231, %v445
    %v680 = vmul.f32 %v232, %v445
    %v681 = vmul.f32 %v233, %v445
    %v682 = vmul.f32 %v234, %v445
    %v683 = vmul.f32 %v235, %v445
    %v684 = vmul.f32 %v236, %v445
    %v685 = vmul.f32 %v237, %v450
    %v686 = vmul.f32 %v238, %v450
    %v687 = vmul.f32 %v239, %v450
    %v688 = vmul.f32 %v240, %v450
    %v689 = vmul.f32 %v241, %v450
    %v690 = vmul.f32 %v242, %v450
    %v691 = vmul.f32 %v243, %v450
    %v692 = vmul.f32 %v244, %v450
    %v693 = vmul.f32 %v245, %v455
    %v694 = vmul.f32 %v246, %v455
    %v695 = vmul.f32 %v247, %v455
    %v696 = vmul.f32 %v248, %v455
    %v697 = vmul.f32 %v249, %v455
    %v698 = vmul.f32 %v250, %v455
    %v699 = vmul.f32 %v251, %v455
    %v700 = vmul.f32 %v252, %v455
    %v701 = vmul.f32 %v253, %v460
    %v702 = vmul.f32 %v254, %v460
    %v703 = vmul.f32 %v255, %v460
    %v704 = vmul.f32 %v256, %v460
    %v705 = vmul.f32 %v257, %v460
    %v706 = vmul.f32 %v258, %v460
    %v707 = vmul.f32 %v259, %v460
    %v708 = vmul.f32 %v260, %v460
    %v709 = vmul.f32 %v261, %v465
    %v710 = vmul.f32 %v262, %v465
    %v711 = vmul.f32 %v263, %v465
    %v712 = vmul.f32 %v264, %v465
    %v713 = vmul.f32 %v265, %v465
    %v714 = vmul.f32 %v266, %v465
    %v715 = vmul.f32 %v267, %v465
    %v716 = vmul.f32 %v268, %v465
    %v717 = vmul.f32 %v269, %v470
    %v718 = vmul.f32 %v270, %v470
    %v719 = vmul.f32 %v271, %v470
    %v720 = vmul.f32 %v272, %v470
    %v721 = vmul.f32 %v273, %v470
    %v722 = vmul.f32 %v274, %v470
    %v723 = vmul.f32 %v275, %v470
    %v724 = vmul.f32 %v276, %v470
    %v725 = vmul.f32 %v277, %v475
    %v726 = vmul.f32 %v278, %v475
    %v727 = vmul.f32 %v279, %v475
    %v728 = vmul.f32 %v280, %v475
    %v729 = vmul.f32 %v281, %v475
    %v730 = vmul.f32 %v282, %v475
    %v731 = vmul.f32 %v283, %v475
    %v732 = vmul.f32 %v284, %v475
    %v733 = vround.ne.pseudo %v477
    %v734 = vround.ne.pseudo %v478
    %v735 = vround.ne.pseudo %v479
    %v736 = vround.ne.pseudo %v480
    %v737 = vround.ne.pseudo %v481
    %v738 = vround.ne.pseudo %v482
    %v739 = vround.ne.pseudo %v483
    %v740 = vround.ne.pseudo %v484
    %v741 = vround.ne.pseudo %v485
    %v742 = vround.ne.pseudo %v486
    %v743 = vround.ne.pseudo %v487
    %v744 = vround.ne.pseudo %v488
    %v745 = vround.ne.pseudo %v489
    %v746 = vround.ne.pseudo %v490
    %v747 = vround.ne.pseudo %v491
    %v748 = vround.ne.pseudo %v492
    %v749 = vround.ne.pseudo %v493
    %v750 = vround.ne.pseudo %v494
    %v751 = vround.ne.pseudo %v495
    %v752 = vround.ne.pseudo %v496
    %v753 = vround.ne.pseudo %v497
    %v754 = vround.ne.pseudo %v498
    %v755 = vround.ne.pseudo %v499
    %v756 = vround.ne.pseudo %v500
    %v757 = vround.ne.pseudo %v501
    %v758 = vround.ne.pseudo %v502
    %v759 = vround.ne.pseudo %v503
    %v760 = vround.ne.pseudo %v504
    %v761 = vround.ne.pseudo %v505
    %v762 = vround.ne.pseudo %v506
    %v763 = vround.ne.pseudo %v507
    %v764 = vround.ne.pseudo %v508
    %v765 = vround.ne.pseudo %v509
    %v766 = vround.ne.pseudo %v510
    %v767 = vround.ne.pseudo %v511
    %v768 = vround.ne.pseudo %v512
    %v769 = vround.ne.pseudo %v513
    %v770 = vround.ne.pseudo %v514
    %v771 = vround.ne.pseudo %v515
    %v772 = vround.ne.pseudo %v516
    %v773 = vround.ne.pseudo %v517
    %v774 = vround.ne.pseudo %v518
    %v775 = vround.ne.pseudo %v519
    %v776 = vround.ne.pseudo %v520
    %v777 = vround.ne.pseudo %v521
    %v778 = vround.ne.pseudo %v522
    %v779 = vround.ne.pseudo %v523
    %v780 = vround.ne.pseudo %v524
    %v781 = vround.ne.pseudo %v525
    %v782 = vround.ne.pseudo %v526
    %v783 = vround.ne.pseudo %v527
    %v784 = vround.ne.pseudo %v528
    %v785 = vround.ne.pseudo %v529
    %v786 = vround.ne.pseudo %v530
    %v787 = vround.ne.pseudo %v531
    %v788 = vround.ne.pseudo %v532
    %v789 = vround.ne.pseudo %v533
    %v790 = vround.ne.pseudo %v534
    %v791 = vround.ne.pseudo %v535
    %v792 = vround.ne.pseudo %v536
    %v793 = vround.ne.pseudo %v537
    %v794 = vround.ne.pseudo %v538
    %v795 = vround.ne.pseudo %v539
    %v796 = vround.ne.pseudo %v540
    %v797 = vround.ne.pseudo %v541
    %v798 = vround.ne.pseudo %v542
    %v799 = vround.ne.pseudo %v543
    %v800 = vround.ne.pseudo %v544
    %v801 = vround.ne.pseudo %v545
    %v802 = vround.ne.pseudo %v546
    %v803 = vround.ne.pseudo %v547
    %v804 = vround.ne.pseudo %v548
    %v805 = vround.ne.pseudo %v549
    %v806 = vround.ne.pseudo %v550
    %v807 = vround.ne.pseudo %v551
    %v808 = vround.ne.pseudo %v552
    %v809 = vround.ne.pseudo %v553
    %v810 = vround.ne.pseudo %v554
    %v811 = vround.ne.pseudo %v555
    %v812 = vround.ne.pseudo %v556
    %v813 = vround.ne.pseudo %v557
    %v814 = vround.ne.pseudo %v558
    %v815 = vround.ne.pseudo %v559
    %v816 = vround.ne.pseudo %v560
    %v817 = vround.ne.pseudo %v561
    %v818 = vround.ne.pseudo %v562
    %v819 = vround.ne.pseudo %v563
    %v820 = vround.ne.pseudo %v564
    %v821 = vround.ne.pseudo %v565
    %v822 = vround.ne.pseudo %v566
    %v823 = vround.ne.pseudo %v567
    %v824 = vround.ne.pseudo %v568
    %v825 = vround.ne.pseudo %v569
    %v826 = vround.ne.pseudo %v570
    %v827 = vround.ne.pseudo %v571
    %v828 = vround.ne.pseudo %v572
    %v829 = vround.ne.pseudo %v573
    %v830 = vround.ne.pseudo %v574
    %v831 = vround.ne.pseudo %v575
    %v832 = vround.ne.pseudo %v576
    %v833 = vround.ne.pseudo %v577
    %v834 = vround.ne.pseudo %v578
    %v835 = vround.ne.pseudo %v579
    %v836 = vround.ne.pseudo %v580
    %v837 = vround.ne.pseudo %v581
    %v838 = vround.ne.pseudo %v582
    %v839 = vround.ne.pseudo %v583
    %v840 = vround.ne.pseudo %v584
    %v841 = vround.ne.pseudo %v585
    %v842 = vround.ne.pseudo %v586
    %v843 = vround.ne.pseudo %v587
    %v844 = vround.ne.pseudo %v588
    %v845 = vround.ne.pseudo %v589
    %v846 = vround.ne.pseudo %v590
    %v847 = vround.ne.pseudo %v591
    %v848 = vround.ne.pseudo %v592
    %v849 = vround.ne.pseudo %v593
    %v850 = vround.ne.pseudo %v594
    %v851 = vround.ne.pseudo %v595
    %v852 = vround.ne.pseudo %v596
    %v853 = vround.ne.pseudo %v597
    %v854 = vround.ne.pseudo %v598
    %v855 = vround.ne.pseudo %v599
    %v856 = vround.ne.pseudo %v600
    %v857 = vround.ne.pseudo %v601
    %v858 = vround.ne.pseudo %v602
    %v859 = vround.ne.pseudo %v603
    %v860 = vround.ne.pseudo %v604
    %v861 = vround.ne.pseudo %v605
    %v862 = vround.ne.pseudo %v606
    %v863 = vround.ne.pseudo %v607
    %v864 = vround.ne.pseudo %v608
    %v865 = vround.ne.pseudo %v609
    %v866 = vround.ne.pseudo %v610
    %v867 = vround.ne.pseudo %v611
    %v868 = vround.ne.pseudo %v612
    %v869 = vround.ne.pseudo %v613
    %v870 = vround.ne.pseudo %v614
    %v871 = vround.ne.pseudo %v615
    %v872 = vround.ne.pseudo %v616
    %v873 = vround.ne.pseudo %v617
    %v874 = vround.ne.pseudo %v618
    %v875 = vround.ne.pseudo %v619
    %v876 = vround.ne.pseudo %v620
    %v877 = vround.ne.pseudo %v621
    %v878 = vround.ne.pseudo %v622
    %v879 = vround.ne.pseudo %v623
    %v880 = vround.ne.pseudo %v624
    %v881 = vround.ne.pseudo %v625
    %v882 = vround.ne.pseudo %v626
    %v883 = vround.ne.pseudo %v627
    %v884 = vround.ne.pseudo %v628
    %v885 = vround.ne.pseudo %v629
    %v886 = vround.ne.pseudo %v630
    %v887 = vround.ne.pseudo %v631
    %v888 = vround.ne.pseudo %v632
    %v889 = vround.ne.pseudo %v633
    %v890 = vround.ne.pseudo %v634
    %v891 = vround.ne.pseudo %v635
    %v892 = vround.ne.pseudo %v636
    %v893 = vround.ne.pseudo %v637
    %v894 = vround.ne.pseudo %v638
    %v895 = vround.ne.pseudo %v639
    %v896 = vround.ne.pseudo %v640
    %v897 = vround.ne.pseudo %v641
    %v898 = vround.ne.pseudo %v642
    %v899 = vround.ne.pseudo %v643
    %v900 = vround.ne.pseudo %v644
    %v901 = vround.ne.pseudo %v645
    %v902 = vround.ne.pseudo %v646
    %v903 = vround.ne.pseudo %v647
    %v904 = vround.ne.pseudo %v648
    %v905 = vround.ne.pseudo %v649
    %v906 = vround.ne.pseudo %v650
    %v907 = vround.ne.pseudo %v651
    %v908 = vround.ne.pseudo %v652
    %v909 = vround.ne.pseudo %v653
    %v910 = vround.ne.pseudo %v654
    %v911 = vround.ne.pseudo %v655
    %v912 = vround.ne.pseudo %v656
    %v913 = vround.ne.pseudo %v657
    %v914 = vround.ne.pseudo %v658
    %v915 = vround.ne.pseudo %v659
    %v916 = vround.ne.pseudo %v660
    %v917 = vround.ne.pseudo %v661
    %v918 = vround.ne.pseudo %v662
    %v919 = vround.ne.pseudo %v663
    %v920 = vround.ne.pseudo %v664
    %v921 = vround.ne.pseudo %v665
    %v922 = vround.ne.pseudo %v666
    %v923 = vround.ne.pseudo %v667
    %v924 = vround.ne.pseudo %v668
    %v925 = vround.ne.pseudo %v669
    %v926 = vround.ne.pseudo %v670
    %v927 = vround.ne.pseudo %v671
    %v928 = vround.ne.pseudo %v672
    %v929 = vround.ne.pseudo %v673
    %v930 = vround.ne.pseudo %v674
    %v931 = vround.ne.pseudo %v675
    %v932 = vround.ne.pseudo %v676
    %v933 = vround.ne.pseudo %v677
    %v934 = vround.ne.pseudo %v678
    %v935 = vround.ne.pseudo %v679
    %v936 = vround.ne.pseudo %v680
    %v937 = vround.ne.pseudo %v681
    %v938 = vround.ne.pseudo %v682
    %v939 = vround.ne.pseudo %v683
    %v940 = vround.ne.pseudo %v684
    %v941 = vround.ne.pseudo %v685
    %v942 = vround.ne.pseudo %v686
    %v943 = vround.ne.pseudo %v687
    %v944 = vround.ne.pseudo %v688
    %v945 = vround.ne.pseudo %v689
    %v946 = vround.ne.pseudo %v690
    %v947 = vround.ne.pseudo %v691
    %v948 = vround.ne.pseudo %v692
    %v949 = vround.ne.pseudo %v693
    %v950 = vround.ne.pseudo %v694
    %v951 = vround.ne.pseudo %v695
    %v952 = vround.ne.pseudo %v696
    %v953 = vround.ne.pseudo %v697
    %v954 = vround.ne.pseudo %v698
    %v955 = vround.ne.pseudo %v699
    %v956 = vround.ne.pseudo %v700
    %v957 = vround.ne.pseudo %v701
    %v958 = vround.ne.pseudo %v702
    %v959 = vround.ne.pseudo %v703
    %v960 = vround.ne.pseudo %v704
    %v961 = vround.ne.pseudo %v705
    %v962 = vround.ne.pseudo %v706
    %v963 = vround.ne.pseudo %v707
    %v964 = vround.ne.pseudo %v708
    %v965 = vround.ne.pseudo %v709
    %v966 = vround.ne.pseudo %v710
    %v967 = vround.ne.pseudo %v711
    %v968 = vround.ne.pseudo %v712
    %v969 = vround.ne.pseudo %v713
    %v970 = vround.ne.pseudo %v714
    %v971 = vround.ne.pseudo %v715
    %v972 = vround.ne.pseudo %v716
    %v973 = vround.ne.pseudo %v717
    %v974 = vround.ne.pseudo %v718
    %v975 = vround.ne.pseudo %v719
    %v976 = vround.ne.pseudo %v720
    %v977 = vround.ne.pseudo %v721
    %v978 = vround.ne.pseudo %v722
    %v979 = vround.ne.pseudo %v723
    %v980 = vround.ne.pseudo %v724
    %v981 = vround.ne.pseudo %v725
    %v982 = vround.ne.pseudo %v726
    %v983 = vround.ne.pseudo %v727
    %v984 = vround.ne.pseudo %v728
    %v985 = vround.ne.pseudo %v729
    %v986 = vround.ne.pseudo %v730
    %v987 = vround.ne.pseudo %v731
    %v988 = vround.ne.pseudo %v732
    %v989 = vmax.f32 %v733, -128.0
    %v990 = vmax.f32 %v734, -128.0
    %v991 = vmax.f32 %v735, -128.0
    %v992 = vmax.f32 %v736, -128.0
    %v993 = vmax.f32 %v737, -128.0
    %v994 = vmax.f32 %v738, -128.0
    %v995 = vmax.f32 %v739, -128.0
    %v996 = vmax.f32 %v740, -128.0
    %v997 = vmax.f32 %v741, -128.0
    %v998 = vmax.f32 %v742, -128.0
    %v999 = vmax.f32 %v743, -128.0
    %v1000 = vmax.f32 %v744, -128.0
    %v1001 = vmax.f32 %v745, -128.0
    %v1002 = vmax.f32 %v746, -128.0
    %v1003 = vmax.f32 %v747, -128.0
    %v1004 = vmax.f32 %v748, -128.0
    %v1005 = vmax.f32 %v749, -128.0
    %v1006 = vmax.f32 %v750, -128.0
    %v1007 = vmax.f32 %v751, -128.0
    %v1008 = vmax.f32 %v752, -128.0
    %v1009 = vmax.f32 %v753, -128.0
    %v1010 = vmax.f32 %v754, -128.0
    %v1011 = vmax.f32 %v755, -128.0
    %v1012 = vmax.f32 %v756, -128.0
    %v1013 = vmax.f32 %v757, -128.0
    %v1014 = vmax.f32 %v758, -128.0
    %v1015 = vmax.f32 %v759, -128.0
    %v1016 = vmax.f32 %v760, -128.0
    %v1017 = vmax.f32 %v761, -128.0
    %v1018 = vmax.f32 %v762, -128.0
    %v1019 = vmax.f32 %v763, -128.0
    %v1020 = vmax.f32 %v764, -128.0
    %v1021 = vmax.f32 %v765, -128.0
    %v1022 = vmax.f32 %v766, -128.0
    %v1023 = vmax.f32 %v767, -128.0
    %v1024 = vmax.f32 %v768, -128.0
    %v1025 = vmax.f32 %v769, -128.0
    %v1026 = vmax.f32 %v770, -128.0
    %v1027 = vmax.f32 %v771, -128.0
    %v1028 = vmax.f32 %v772, -128.0
    %v1029 = vmax.f32 %v773, -128.0
    %v1030 = vmax.f32 %v774, -128.0
    %v1031 = vmax.f32 %v775, -128.0
    %v1032 = vmax.f32 %v776, -128.0
    %v1033 = vmax.f32 %v777, -128.0
    %v1034 = vmax.f32 %v778, -128.0
    %v1035 = vmax.f32 %v779, -128.0
    %v1036 = vmax.f32 %v780, -128.0
    %v1037 = vmax.f32 %v781, -128.0
    %v1038 = vmax.f32 %v782, -128.0
    %v1039 = vmax.f32 %v783, -128.0
    %v1040 = vmax.f32 %v784, -128.0
    %v1041 = vmax.f32 %v785, -128.0
    %v1042 = vmax.f32 %v786, -128.0
    %v1043 = vmax.f32 %v787, -128.0
    %v1044 = vmax.f32 %v788, -128.0
    %v1045 = vmax.f32 %v789, -128.0
    %v1046 = vmax.f32 %v790, -128.0
    %v1047 = vmax.f32 %v791, -128.0
    %v1048 = vmax.f32 %v792, -128.0
    %v1049 = vmax.f32 %v793, -128.0
    %v1050 = vmax.f32 %v794, -128.0
    %v1051 = vmax.f32 %v795, -128.0
    %v1052 = vmax.f32 %v796, -128.0
    %v1053 = vmax.f32 %v797, -128.0
    %v1054 = vmax.f32 %v798, -128.0
    %v1055 = vmax.f32 %v799, -128.0
    %v1056 = vmax.f32 %v800, -128.0
    %v1057 = vmax.f32 %v801, -128.0
    %v1058 = vmax.f32 %v802, -128.0
    %v1059 = vmax.f32 %v803, -128.0
    %v1060 = vmax.f32 %v804, -128.0
    %v1061 = vmax.f32 %v805, -128.0
    %v1062 = vmax.f32 %v806, -128.0
    %v1063 = vmax.f32 %v807, -128.0
    %v1064 = vmax.f32 %v808, -128.0
    %v1065 = vmax.f32 %v809, -128.0
    %v1066 = vmax.f32 %v810, -128.0
    %v1067 = vmax.f32 %v811, -128.0
    %v1068 = vmax.f32 %v812, -128.0
    %v1069 = vmax.f32 %v813, -128.0
    %v1070 = vmax.f32 %v814, -128.0
    %v1071 = vmax.f32 %v815, -128.0
    %v1072 = vmax.f32 %v816, -128.0
    %v1073 = vmax.f32 %v817, -128.0
    %v1074 = vmax.f32 %v818, -128.0
    %v1075 = vmax.f32 %v819, -128.0
    %v1076 = vmax.f32 %v820, -128.0
    %v1077 = vmax.f32 %v821, -128.0
    %v1078 = vmax.f32 %v822, -128.0
    %v1079 = vmax.f32 %v823, -128.0
    %v1080 = vmax.f32 %v824, -128.0
    %v1081 = vmax.f32 %v825, -128.0
    %v1082 = vmax.f32 %v826, -128.0
    %v1083 = vmax.f32 %v827, -128.0
    %v1084 = vmax.f32 %v828, -128.0
    %v1085 = vmax.f32 %v829, -128.0
    %v1086 = vmax.f32 %v830, -128.0
    %v1087 = vmax.f32 %v831, -128.0
    %v1088 = vmax.f32 %v832, -128.0
    %v1089 = vmax.f32 %v833, -128.0
    %v1090 = vmax.f32 %v834, -128.0
    %v1091 = vmax.f32 %v835, -128.0
    %v1092 = vmax.f32 %v836, -128.0
    %v1093 = vmax.f32 %v837, -128.0
    %v1094 = vmax.f32 %v838, -128.0
    %v1095 = vmax.f32 %v839, -128.0
    %v1096 = vmax.f32 %v840, -128.0
    %v1097 = vmax.f32 %v841, -128.0
    %v1098 = vmax.f32 %v842, -128.0
    %v1099 = vmax.f32 %v843, -128.0
    %v1100 = vmax.f32 %v844, -128.0
    %v1101 = vmax.f32 %v845, -128.0
    %v1102 = vmax.f32 %v846, -128.0
    %v1103 = vmax.f32 %v847, -128.0
    %v1104 = vmax.f32 %v848, -128.0
    %v1105 = vmax.f32 %v849, -128.0
    %v1106 = vmax.f32 %v850, -128.0
    %v1107 = vmax.f32 %v851, -128.0
    %v1108 = vmax.f32 %v852, -128.0
    %v1109 = vmax.f32 %v853, -128.0
    %v1110 = vmax.f32 %v854, -128.0
    %v1111 = vmax.f32 %v855, -128.0
    %v1112 = vmax.f32 %v856, -128.0
    %v1113 = vmax.f32 %v857, -128.0
    %v1114 = vmax.f32 %v858, -128.0
    %v1115 = vmax.f32 %v859, -128.0
    %v1116 = vmax.f32 %v860, -128.0
    %v1117 = vmax.f32 %v861, -128.0
    %v1118 = vmax.f32 %v862, -128.0
    %v1119 = vmax.f32 %v863, -128.0
    %v1120 = vmax.f32 %v864, -128.0
    %v1121 = vmax.f32 %v865, -128.0
    %v1122 = vmax.f32 %v866, -128.0
    %v1123 = vmax.f32 %v867, -128.0
    %v1124 = vmax.f32 %v868, -128.0
    %v1125 = vmax.f32 %v869, -128.0
    %v1126 = vmax.f32 %v870, -128.0
    %v1127 = vmax.f32 %v871, -128.0
    %v1128 = vmax.f32 %v872, -128.0
    %v1129 = vmax.f32 %v873, -128.0
    %v1130 = vmax.f32 %v874, -128.0
    %v1131 = vmax.f32 %v875, -128.0
    %v1132 = vmax.f32 %v876, -128.0
    %v1133 = vmax.f32 %v877, -128.0
    %v1134 = vmax.f32 %v878, -128.0
    %v1135 = vmax.f32 %v879, -128.0
    %v1136 = vmax.f32 %v880, -128.0
    %v1137 = vmax.f32 %v881, -128.0
    %v1138 = vmax.f32 %v882, -128.0
    %v1139 = vmax.f32 %v883, -128.0
    %v1140 = vmax.f32 %v884, -128.0
    %v1141 = vmax.f32 %v885, -128.0
    %v1142 = vmax.f32 %v886, -128.0
    %v1143 = vmax.f32 %v887, -128.0
    %v1144 = vmax.f32 %v888, -128.0
    %v1145 = vmax.f32 %v889, -128.0
    %v1146 = vmax.f32 %v890, -128.0
    %v1147 = vmax.f32 %v891, -128.0
    %v1148 = vmax.f32 %v892, -128.0
    %v1149 = vmax.f32 %v893, -128.0
    %v1150 = vmax.f32 %v894, -128.0
    %v1151 = vmax.f32 %v895, -128.0
    %v1152 = vmax.f32 %v896, -128.0
    %v1153 = vmax.f32 %v897, -128.0
    %v1154 = vmax.f32 %v898, -128.0
    %v1155 = vmax.f32 %v899, -128.0
    %v1156 = vmax.f32 %v900, -128.0
    %v1157 = vmax.f32 %v901, -128.0
    %v1158 = vmax.f32 %v902, -128.0
    %v1159 = vmax.f32 %v903, -128.0
    %v1160 = vmax.f32 %v904, -128.0
    %v1161 = vmax.f32 %v905, -128.0
    %v1162 = vmax.f32 %v906, -128.0
    %v1163 = vmax.f32 %v907, -128.0
    %v1164 = vmax.f32 %v908, -128.0
    %v1165 = vmax.f32 %v909, -128.0
    %v1166 = vmax.f32 %v910, -128.0
    %v1167 = vmax.f32 %v911, -128.0
    %v1168 = vmax.f32 %v912, -128.0
    %v1169 = vmax.f32 %v913, -128.0
    %v1170 = vmax.f32 %v914, -128.0
    %v1171 = vmax.f32 %v915, -128.0
    %v1172 = vmax.f32 %v916, -128.0
    %v1173 = vmax.f32 %v917, -128.0
    %v1174 = vmax.f32 %v918, -128.0
    %v1175 = vmax.f32 %v919, -128.0
    %v1176 = vmax.f32 %v920, -128.0
    %v1177 = vmax.f32 %v921, -128.0
    %v1178 = vmax.f32 %v922, -128.0
    %v1179 = vmax.f32 %v923, -128.0
    %v1180 = vmax.f32 %v924, -128.0
    %v1181 = vmax.f32 %v925, -128.0
    %v1182 = vmax.f32 %v926, -128.0
    %v1183 = vmax.f32 %v927, -128.0
    %v1184 = vmax.f32 %v928, -128.0
    %v1185 = vmax.f32 %v929, -128.0
    %v1186 = vmax.f32 %v930, -128.0
    %v1187 = vmax.f32 %v931, -128.0
    %v1188 = vmax.f32 %v932, -128.0
    %v1189 = vmax.f32 %v933, -128.0
    %v1190 = vmax.f32 %v934, -128.0
    %v1191 = vmax.f32 %v935, -128.0
    %v1192 = vmax.f32 %v936, -128.0
    %v1193 = vmax.f32 %v937, -128.0
    %v1194 = vmax.f32 %v938, -128.0
    %v1195 = vmax.f32 %v939, -128.0
    %v1196 = vmax.f32 %v940, -128.0
    %v1197 = vmax.f32 %v941, -128.0
    %v1198 = vmax.f32 %v942, -128.0
    %v1199 = vmax.f32 %v943, -128.0
    %v1200 = vmax.f32 %v944, -128.0
    %v1201 = vmax.f32 %v945, -128.0
    %v1202 = vmax.f32 %v946, -128.0
    %v1203 = vmax.f32 %v947, -128.0
    %v1204 = vmax.f32 %v948, -128.0
    %v1205 = vmax.f32 %v949, -128.0
    %v1206 = vmax.f32 %v950, -128.0
    %v1207 = vmax.f32 %v951, -128.0
    %v1208 = vmax.f32 %v952, -128.0
    %v1209 = vmax.f32 %v953, -128.0
    %v1210 = vmax.f32 %v954, -128.0
    %v1211 = vmax.f32 %v955, -128.0
    %v1212 = vmax.f32 %v956, -128.0
    %v1213 = vmax.f32 %v957, -128.0
    %v1214 = vmax.f32 %v958, -128.0
    %v1215 = vmax.f32 %v959, -128.0
    %v1216 = vmax.f32 %v960, -128.0
    %v1217 = vmax.f32 %v961, -128.0
    %v1218 = vmax.f32 %v962, -128.0
    %v1219 = vmax.f32 %v963, -128.0
    %v1220 = vmax.f32 %v964, -128.0
    %v1221 = vmax.f32 %v965, -128.0
    %v1222 = vmax.f32 %v966, -128.0
    %v1223 = vmax.f32 %v967, -128.0
    %v1224 = vmax.f32 %v968, -128.0
    %v1225 = vmax.f32 %v969, -128.0
    %v1226 = vmax.f32 %v970, -128.0
    %v1227 = vmax.f32 %v971, -128.0
    %v1228 = vmax.f32 %v972, -128.0
    %v1229 = vmax.f32 %v973, -128.0
    %v1230 = vmax.f32 %v974, -128.0
    %v1231 = vmax.f32 %v975, -128.0
    %v1232 = vmax.f32 %v976, -128.0
    %v1233 = vmax.f32 %v977, -128.0
    %v1234 = vmax.f32 %v978, -128.0
    %v1235 = vmax.f32 %v979, -128.0
    %v1236 = vmax.f32 %v980, -128.0
    %v1237 = vmax.f32 %v981, -128.0
    %v1238 = vmax.f32 %v982, -128.0
    %v1239 = vmax.f32 %v983, -128.0
    %v1240 = vmax.f32 %v984, -128.0
    %v1241 = vmax.f32 %v985, -128.0
    %v1242 = vmax.f32 %v986, -128.0
    %v1243 = vmax.f32 %v987, -128.0
    %v1244 = vmax.f32 %v988, -128.0
    %v1245 = vmin.f32 %v989, 127.0
    %v1246 = vmin.f32 %v990, 127.0
    %v1247 = vmin.f32 %v991, 127.0
    %v1248 = vmin.f32 %v992, 127.0
    %v1249 = vmin.f32 %v993, 127.0
    %v1250 = vmin.f32 %v994, 127.0
    %v1251 = vmin.f32 %v995, 127.0
    %v1252 = vmin.f32 %v996, 127.0
    %v1253 = vmin.f32 %v997, 127.0
    %v1254 = vmin.f32 %v998, 127.0
    %v1255 = vmin.f32 %v999, 127.0
    %v1256 = vmin.f32 %v1000, 127.0
    %v1257 = vmin.f32 %v1001, 127.0
    %v1258 = vmin.f32 %v1002, 127.0
    %v1259 = vmin.f32 %v1003, 127.0
    %v1260 = vmin.f32 %v1004, 127.0
    %v1261 = vmin.f32 %v1005, 127.0
    %v1262 = vmin.f32 %v1006, 127.0
    %v1263 = vmin.f32 %v1007, 127.0
    %v1264 = vmin.f32 %v1008, 127.0
    %v1265 = vmin.f32 %v1009, 127.0
    %v1266 = vmin.f32 %v1010, 127.0
    %v1267 = vmin.f32 %v1011, 127.0
    %v1268 = vmin.f32 %v1012, 127.0
    %v1269 = vmin.f32 %v1013, 127.0
    %v1270 = vmin.f32 %v1014, 127.0
    %v1271 = vmin.f32 %v1015, 127.0
    %v1272 = vmin.f32 %v1016, 127.0
    %v1273 = vmin.f32 %v1017, 127.0
    %v1274 = vmin.f32 %v1018, 127.0
    %v1275 = vmin.f32 %v1019, 127.0
    %v1276 = vmin.f32 %v1020, 127.0
    %v1277 = vmin.f32 %v1021, 127.0
    %v1278 = vmin.f32 %v1022, 127.0
    %v1279 = vmin.f32 %v1023, 127.0
    %v1280 = vmin.f32 %v1024, 127.0
    %v1281 = vmin.f32 %v1025, 127.0
    %v1282 = vmin.f32 %v1026, 127.0
    %v1283 = vmin.f32 %v1027, 127.0
    %v1284 = vmin.f32 %v1028, 127.0
    %v1285 = vmin.f32 %v1029, 127.0
    %v1286 = vmin.f32 %v1030, 127.0
    %v1287 = vmin.f32 %v1031, 127.0
    %v1288 = vmin.f32 %v1032, 127.0
    %v1289 = vmin.f32 %v1033, 127.0
    %v1290 = vmin.f32 %v1034, 127.0
    %v1291 = vmin.f32 %v1035, 127.0
    %v1292 = vmin.f32 %v1036, 127.0
    %v1293 = vmin.f32 %v1037, 127.0
    %v1294 = vmin.f32 %v1038, 127.0
    %v1295 = vmin.f32 %v1039, 127.0
    %v1296 = vmin.f32 %v1040, 127.0
    %v1297 = vmin.f32 %v1041, 127.0
    %v1298 = vmin.f32 %v1042, 127.0
    %v1299 = vmin.f32 %v1043, 127.0
    %v1300 = vmin.f32 %v1044, 127.0
    %v1301 = vmin.f32 %v1045, 127.0
    %v1302 = vmin.f32 %v1046, 127.0
    %v1303 = vmin.f32 %v1047, 127.0
    %v1304 = vmin.f32 %v1048, 127.0
    %v1305 = vmin.f32 %v1049, 127.0
    %v1306 = vmin.f32 %v1050, 127.0
    %v1307 = vmin.f32 %v1051, 127.0
    %v1308 = vmin.f32 %v1052, 127.0
    %v1309 = vmin.f32 %v1053, 127.0
    %v1310 = vmin.f32 %v1054, 127.0
    %v1311 = vmin.f32 %v1055, 127.0
    %v1312 = vmin.f32 %v1056, 127.0
    %v1313 = vmin.f32 %v1057, 127.0
    %v1314 = vmin.f32 %v1058, 127.0
    %v1315 = vmin.f32 %v1059, 127.0
    %v1316 = vmin.f32 %v1060, 127.0
    %v1317 = vmin.f32 %v1061, 127.0
    %v1318 = vmin.f32 %v1062, 127.0
    %v1319 = vmin.f32 %v1063, 127.0
    %v1320 = vmin.f32 %v1064, 127.0
    %v1321 = vmin.f32 %v1065, 127.0
    %v1322 = vmin.f32 %v1066, 127.0
    %v1323 = vmin.f32 %v1067, 127.0
    %v1324 = vmin.f32 %v1068, 127.0
    %v1325 = vmin.f32 %v1069, 127.0
    %v1326 = vmin.f32 %v1070, 127.0
    %v1327 = vmin.f32 %v1071, 127.0
    %v1328 = vmin.f32 %v1072, 127.0
    %v1329 = vmin.f32 %v1073, 127.0
    %v1330 = vmin.f32 %v1074, 127.0
    %v1331 = vmin.f32 %v1075, 127.0
    %v1332 = vmin.f32 %v1076, 127.0
    %v1333 = vmin.f32 %v1077, 127.0
    %v1334 = vmin.f32 %v1078, 127.0
    %v1335 = vmin.f32 %v1079, 127.0
    %v1336 = vmin.f32 %v1080, 127.0
    %v1337 = vmin.f32 %v1081, 127.0
    %v1338 = vmin.f32 %v1082, 127.0
    %v1339 = vmin.f32 %v1083, 127.0
    %v1340 = vmin.f32 %v1084, 127.0
    %v1341 = vmin.f32 %v1085, 127.0
    %v1342 = vmin.f32 %v1086, 127.0
    %v1343 = vmin.f32 %v1087, 127.0
    %v1344 = vmin.f32 %v1088, 127.0
    %v1345 = vmin.f32 %v1089, 127.0
    %v1346 = vmin.f32 %v1090, 127.0
    %v1347 = vmin.f32 %v1091, 127.0
    %v1348 = vmin.f32 %v1092, 127.0
    %v1349 = vmin.f32 %v1093, 127.0
    %v1350 = vmin.f32 %v1094, 127.0
    %v1351 = vmin.f32 %v1095, 127.0
    %v1352 = vmin.f32 %v1096, 127.0
    %v1353 = vmin.f32 %v1097, 127.0
    %v1354 = vmin.f32 %v1098, 127.0
    %v1355 = vmin.f32 %v1099, 127.0
    %v1356 = vmin.f32 %v1100, 127.0
    %v1357 = vmin.f32 %v1101, 127.0
    %v1358 = vmin.f32 %v1102, 127.0
    %v1359 = vmin.f32 %v1103, 127.0
    %v1360 = vmin.f32 %v1104, 127.0
    %v1361 = vmin.f32 %v1105, 127.0
    %v1362 = vmin.f32 %v1106, 127.0
    %v1363 = vmin.f32 %v1107, 127.0
    %v1364 = vmin.f32 %v1108, 127.0
    %v1365 = vmin.f32 %v1109, 127.0
    %v1366 = vmin.f32 %v1110, 127.0
    %v1367 = vmin.f32 %v1111, 127.0
    %v1368 = vmin.f32 %v1112, 127.0
    %v1369 = vmin.f32 %v1113, 127.0
    %v1370 = vmin.f32 %v1114, 127.0
    %v1371 = vmin.f32 %v1115, 127.0
    %v1372 = vmin.f32 %v1116, 127.0
    %v1373 = vmin.f32 %v1117, 127.0
    %v1374 = vmin.f32 %v1118, 127.0
    %v1375 = vmin.f32 %v1119, 127.0
    %v1376 = vmin.f32 %v1120, 127.0
    %v1377 = vmin.f32 %v1121, 127.0
    %v1378 = vmin.f32 %v1122, 127.0
    %v1379 = vmin.f32 %v1123, 127.0
    %v1380 = vmin.f32 %v1124, 127.0
    %v1381 = vmin.f32 %v1125, 127.0
    %v1382 = vmin.f32 %v1126, 127.0
    %v1383 = vmin.f32 %v1127, 127.0
    %v1384 = vmin.f32 %v1128, 127.0
    %v1385 = vmin.f32 %v1129, 127.0
    %v1386 = vmin.f32 %v1130, 127.0
    %v1387 = vmin.f32 %v1131, 127.0
    %v1388 = vmin.f32 %v1132, 127.0
    %v1389 = vmin.f32 %v1133, 127.0
    %v1390 = vmin.f32 %v1134, 127.0
    %v1391 = vmin.f32 %v1135, 127.0
    %v1392 = vmin.f32 %v1136, 127.0
    %v1393 = vmin.f32 %v1137, 127.0
    %v1394 = vmin.f32 %v1138, 127.0
    %v1395 = vmin.f32 %v1139, 127.0
    %v1396 = vmin.f32 %v1140, 127.0
    %v1397 = vmin.f32 %v1141, 127.0
    %v1398 = vmin.f32 %v1142, 127.0
    %v1399 = vmin.f32 %v1143, 127.0
    %v1400 = vmin.f32 %v1144, 127.0
    %v1401 = vmin.f32 %v1145, 127.0
    %v1402 = vmin.f32 %v1146, 127.0
    %v1403 = vmin.f32 %v1147, 127.0
    %v1404 = vmin.f32 %v1148, 127.0
    %v1405 = vmin.f32 %v1149, 127.0
    %v1406 = vmin.f32 %v1150, 127.0
    %v1407 = vmin.f32 %v1151, 127.0
    %v1408 = vmin.f32 %v1152, 127.0
    %v1409 = vmin.f32 %v1153, 127.0
    %v1410 = vmin.f32 %v1154, 127.0
    %v1411 = vmin.f32 %v1155, 127.0
    %v1412 = vmin.f32 %v1156, 127.0
    %v1413 = vmin.f32 %v1157, 127.0
    %v1414 = vmin.f32 %v1158, 127.0
    %v1415 = vmin.f32 %v1159, 127.0
    %v1416 = vmin.f32 %v1160, 127.0
    %v1417 = vmin.f32 %v1161, 127.0
    %v1418 = vmin.f32 %v1162, 127.0
    %v1419 = vmin.f32 %v1163, 127.0
    %v1420 = vmin.f32 %v1164, 127.0
    %v1421 = vmin.f32 %v1165, 127.0
    %v1422 = vmin.f32 %v1166, 127.0
    %v1423 = vmin.f32 %v1167, 127.0
    %v1424 = vmin.f32 %v1168, 127.0
    %v1425 = vmin.f32 %v1169, 127.0
    %v1426 = vmin.f32 %v1170, 127.0
    %v1427 = vmin.f32 %v1171, 127.0
    %v1428 = vmin.f32 %v1172, 127.0
    %v1429 = vmin.f32 %v1173, 127.0
    %v1430 = vmin.f32 %v1174, 127.0
    %v1431 = vmin.f32 %v1175, 127.0
    %v1432 = vmin.f32 %v1176, 127.0
    %v1433 = vmin.f32 %v1177, 127.0
    %v1434 = vmin.f32 %v1178, 127.0
    %v1435 = vmin.f32 %v1179, 127.0
    %v1436 = vmin.f32 %v1180, 127.0
    %v1437 = vmin.f32 %v1181, 127.0
    %v1438 = vmin.f32 %v1182, 127.0
    %v1439 = vmin.f32 %v1183, 127.0
    %v1440 = vmin.f32 %v1184, 127.0
    %v1441 = vmin.f32 %v1185, 127.0
    %v1442 = vmin.f32 %v1186, 127.0
    %v1443 = vmin.f32 %v1187, 127.0
    %v1444 = vmin.f32 %v1188, 127.0
    %v1445 = vmin.f32 %v1189, 127.0
    %v1446 = vmin.f32 %v1190, 127.0
    %v1447 = vmin.f32 %v1191, 127.0
    %v1448 = vmin.f32 %v1192, 127.0
    %v1449 = vmin.f32 %v1193, 127.0
    %v1450 = vmin.f32 %v1194, 127.0
    %v1451 = vmin.f32 %v1195, 127.0
    %v1452 = vmin.f32 %v1196, 127.0
    %v1453 = vmin.f32 %v1197, 127.0
    %v1454 = vmin.f32 %v1198, 127.0
    %v1455 = vmin.f32 %v1199, 127.0
    %v1456 = vmin.f32 %v1200, 127.0
    %v1457 = vmin.f32 %v1201, 127.0
    %v1458 = vmin.f32 %v1202, 127.0
    %v1459 = vmin.f32 %v1203, 127.0
    %v1460 = vmin.f32 %v1204, 127.0
    %v1461 = vmin.f32 %v1205, 127.0
    %v1462 = vmin.f32 %v1206, 127.0
    %v1463 = vmin.f32 %v1207, 127.0
    %v1464 = vmin.f32 %v1208, 127.0
    %v1465 = vmin.f32 %v1209, 127.0
    %v1466 = vmin.f32 %v1210, 127.0
    %v1467 = vmin.f32 %v1211, 127.0
    %v1468 = vmin.f32 %v1212, 127.0
    %v1469 = vmin.f32 %v1213, 127.0
    %v1470 = vmin.f32 %v1214, 127.0
    %v1471 = vmin.f32 %v1215, 127.0
    %v1472 = vmin.f32 %v1216, 127.0
    %v1473 = vmin.f32 %v1217, 127.0
    %v1474 = vmin.f32 %v1218, 127.0
    %v1475 = vmin.f32 %v1219, 127.0
    %v1476 = vmin.f32 %v1220, 127.0
    %v1477 = vmin.f32 %v1221, 127.0
    %v1478 = vmin.f32 %v1222, 127.0
    %v1479 = vmin.f32 %v1223, 127.0
    %v1480 = vmin.f32 %v1224, 127.0
    %v1481 = vmin.f32 %v1225, 127.0
    %v1482 = vmin.f32 %v1226, 127.0
    %v1483 = vmin.f32 %v1227, 127.0
    %v1484 = vmin.f32 %v1228, 127.0
    %v1485 = vmin.f32 %v1229, 127.0
    %v1486 = vmin.f32 %v1230, 127.0
    %v1487 = vmin.f32 %v1231, 127.0
    %v1488 = vmin.f32 %v1232, 127.0
    %v1489 = vmin.f32 %v1233, 127.0
    %v1490 = vmin.f32 %v1234, 127.0
    %v1491 = vmin.f32 %v1235, 127.0
    %v1492 = vmin.f32 %v1236, 127.0
    %v1493 = vmin.f32 %v1237, 127.0
    %v1494 = vmin.f32 %v1238, 127.0
    %v1495 = vmin.f32 %v1239, 127.0
    %v1496 = vmin.f32 %v1240, 127.0
    %v1497 = vmin.f32 %v1241, 127.0
    %v1498 = vmin.f32 %v1242, 127.0
    %v1499 = vmin.f32 %v1243, 127.0
    %v1500 = vmin.f32 %v1244, 127.0
    %v1501 = vld [vmem:[%s2] sm:$0xff]
    %v1502 = vld [vmem:[%s2 + $0x8] sm:$0xff]
    %v1503 = vld [vmem:[%s2 + $0x10] sm:$0xff]
    %v1504 = vld [vmem:[%s2 + $0x18] sm:$0xff]
    %v1505 = vld [vmem:[%s2 + $0x20] sm:$0xff]
    %v1506 = vld [vmem:[%s2 + $0x28] sm:$0xff]
    %v1507 = vld [vmem:[%s2 + $0x30] sm:$0xff]
    %v1508 = vld [vmem:[%s2 + $0x38] sm:$0xff]
    %v1509 = vld [vmem:[%s2 + $0x40] sm:$0xff]
    %v1510 = vld [vmem:[%s2 + $0x48] sm:$0xff]
    %v1511 = vld [vmem:[%s2 + $0x50] sm:$0xff]
    %v1512 = vld [vmem:[%s2 + $0x58] sm:$0xff]
    %v1513 = vld [vmem:[%s2 + $0x60] sm:$0xff]
    %v1514 = vld [vmem:[%s2 + $0x68] sm:$0xff]
    %v1515 = vld [vmem:[%s2 + $0x70] sm:$0xff]
    %v1516 = vld [vmem:[%s2 + $0x78] sm:$0xff]
    %v1517 = vld [vmem:[%s2 + $0x80] sm:$0xff]
    %v1518 = vld [vmem:[%s2 + $0x88] sm:$0xff]
    %v1519 = vld [vmem:[%s2 + $0x90] sm:$0xff]
    %v1520 = vld [vmem:[%s2 + $0x98] sm:$0xff]
    %v1521 = vld [vmem:[%s2 + $0xa0] sm:$0xff]
    %v1522 = vld [vmem:[%s2 + $0xa8] sm:$0xff]
    %v1523 = vld [vmem:[%s2 + $0xb0] sm:$0xff]
    %v1524 = vld [vmem:[%s2 + $0xb8] sm:$0xff]
    %v1525 = vld [vmem:[%s2 + $0xc0] sm:$0xff]
    %v1526 = vld [vmem:[%s2 + $0xc8] sm:$0xff]
    %v1527 = vld [vmem:[%s2 + $0xd0] sm:$0xff]
    %v1528 = vld [vmem:[%s2 + $0xd8] sm:$0xff]
    %v1529 = vld [vmem:[%s2 + $0xe0] sm:$0xff]
    %v1530 = vld [vmem:[%s2 + $0xe8] sm:$0xff]
    %v1531 = vld [vmem:[%s2 + $0xf0] sm:$0xff]
    %v1532 = vld [vmem:[%s2 + $0xf8] sm:$0xff]
    %1534 = vset.pattern.permute.xlu0 0
    %1535 = vperm.xlu0 %1534, %v1501
    %v1536 = vpop.permute.xlu0 %1535
    %1539 = vset.pattern.permute.xlu0 0
    %1540 = vperm.xlu0 %1539, %v1502
    %v1541 = vpop.permute.xlu0 %1540
    %1544 = vset.pattern.permute.xlu0 0
    %1545 = vperm.xlu0 %1544, %v1503
    %v1546 = vpop.permute.xlu0 %1545
    %1549 = vset.pattern.permute.xlu0 0
    %1550 = vperm.xlu0 %1549, %v1504
    %v1551 = vpop.permute.xlu0 %1550
    %1554 = vset.pattern.permute.xlu0 0
    %1555 = vperm.xlu0 %1554, %v1505
    %v1556 = vpop.permute.xlu0 %1555
    %1559 = vset.pattern.permute.xlu0 0
    %1560 = vperm.xlu0 %1559, %v1506
    %v1561 = vpop.permute.xlu0 %1560
    %1564 = vset.pattern.permute.xlu0 0
    %1565 = vperm.xlu0 %1564, %v1507
    %v1566 = vpop.permute.xlu0 %1565
    %1569 = vset.pattern.permute.xlu0 0
    %1570 = vperm.xlu0 %1569, %v1508
    %v1571 = vpop.permute.xlu0 %1570
    %1574 = vset.pattern.permute.xlu0 0
    %1575 = vperm.xlu0 %1574, %v1509
    %v1576 = vpop.permute.xlu0 %1575
    %1579 = vset.pattern.permute.xlu0 0
    %1580 = vperm.xlu0 %1579, %v1510
    %v1581 = vpop.permute.xlu0 %1580
    %1584 = vset.pattern.permute.xlu0 0
    %1585 = vperm.xlu0 %1584, %v1511
    %v1586 = vpop.permute.xlu0 %1585
    %1589 = vset.pattern.permute.xlu0 0
    %1590 = vperm.xlu0 %1589, %v1512
    %v1591 = vpop.permute.xlu0 %1590
    %1594 = vset.pattern.permute.xlu0 0
    %1595 = vperm.xlu0 %1594, %v1513
    %v1596 = vpop.permute.xlu0 %1595
    %1599 = vset.pattern.permute.xlu0 0
    %1600 = vperm.xlu0 %1599, %v1514
    %v1601 = vpop.permute.xlu0 %1600
    %1604 = vset.pattern.permute.xlu0 0
    %1605 = vperm.xlu0 %1604, %v1515
    %v1606 = vpop.permute.xlu0 %1605
    %1609 = vset.pattern.permute.xlu0 0
    %1610 = vperm.xlu0 %1609, %v1516
    %v1611 = vpop.permute.xlu0 %1610
    %1614 = vset.pattern.permute.xlu0 0
    %1615 = vperm.xlu0 %1614, %v1517
    %v1616 = vpop.permute.xlu0 %1615
    %1619 = vset.pattern.permute.xlu0 0
    %1620 = vperm.xlu0 %1619, %v1518
    %v1621 = vpop.permute.xlu0 %1620
    %1624 = vset.pattern.permute.xlu0 0
    %1625 = vperm.xlu0 %1624, %v1519
    %v1626 = vpop.permute.xlu0 %1625
    %1629 = vset.pattern.permute.xlu0 0
    %1630 = vperm.xlu0 %1629, %v1520
    %v1631 = vpop.permute.xlu0 %1630
    %1634 = vset.pattern.permute.xlu0 0
    %1635 = vperm.xlu0 %1634, %v1521
    %v1636 = vpop.permute.xlu0 %1635
    %1639 = vset.pattern.permute.xlu0 0
    %1640 = vperm.xlu0 %1639, %v1522
    %v1641 = vpop.permute.xlu0 %1640
    %1644 = vset.pattern.permute.xlu0 0
    %1645 = vperm.xlu0 %1644, %v1523
    %v1646 = vpop.permute.xlu0 %1645
    %1649 = vset.pattern.permute.xlu0 0
    %1650 = vperm.xlu0 %1649, %v1524
    %v1651 = vpop.permute.xlu0 %1650
    %1654 = vset.pattern.permute.xlu0 0
    %1655 = vperm.xlu0 %1654, %v1525
    %v1656 = vpop.permute.xlu0 %1655
    %1659 = vset.pattern.permute.xlu0 0
    %1660 = vperm.xlu0 %1659, %v1526
    %v1661 = vpop.permute.xlu0 %1660
    %1664 = vset.pattern.permute.xlu0 0
    %1665 = vperm.xlu0 %1664, %v1527
    %v1666 = vpop.permute.xlu0 %1665
    %1669 = vset.pattern.permute.xlu0 0
    %1670 = vperm.xlu0 %1669, %v1528
    %v1671 = vpop.permute.xlu0 %1670
    %1674 = vset.pattern.permute.xlu0 0
    %1675 = vperm.xlu0 %1674, %v1529
    %v1676 = vpop.permute.xlu0 %1675
    %1679 = vset.pattern.permute.xlu0 0
    %1680 = vperm.xlu0 %1679, %v1530
    %v1681 = vpop.permute.xlu0 %1680
    %1684 = vset.pattern.permute.xlu0 0
    %1685 = vperm.xlu0 %1684, %v1531
    %v1686 = vpop.permute.xlu0 %1685
    %1689 = vset.pattern.permute.xlu0 0
    %1690 = vperm.xlu0 %1689, %v1532
    %v1691 = vpop.permute.xlu0 %1690
    %v1693 = vmul.f32 %v1536, %v1245
    %v1694 = vmul.f32 %v1536, %v1246
    %v1695 = vmul.f32 %v1536, %v1247
    %v1696 = vmul.f32 %v1536, %v1248
    %v1697 = vmul.f32 %v1536, %v1249
    %v1698 = vmul.f32 %v1536, %v1250
    %v1699 = vmul.f32 %v1536, %v1251
    %v1700 = vmul.f32 %v1536, %v1252
    %v1701 = vmul.f32 %v1541, %v1253
    %v1702 = vmul.f32 %v1541, %v1254
    %v1703 = vmul.f32 %v1541, %v1255
    %v1704 = vmul.f32 %v1541, %v1256
    %v1705 = vmul.f32 %v1541, %v1257
    %v1706 = vmul.f32 %v1541, %v1258
    %v1707 = vmul.f32 %v1541, %v1259
    %v1708 = vmul.f32 %v1541, %v1260
    %v1709 = vmul.f32 %v1546, %v1261
    %v1710 = vmul.f32 %v1546, %v1262
    %v1711 = vmul.f32 %v1546, %v1263
    %v1712 = vmul.f32 %v1546, %v1264
    %v1713 = vmul.f32 %v1546, %v1265
    %v1714 = vmul.f32 %v1546, %v1266
    %v1715 = vmul.f32 %v1546, %v1267
    %v1716 = vmul.f32 %v1546, %v1268
    %v1717 = vmul.f32 %v1551, %v1269
    %v1718 = vmul.f32 %v1551, %v1270
    %v1719 = vmul.f32 %v1551, %v1271
    %v1720 = vmul.f32 %v1551, %v1272
    %v1721 = vmul.f32 %v1551, %v1273
    %v1722 = vmul.f32 %v1551, %v1274
    %v1723 = vmul.f32 %v1551, %v1275
    %v1724 = vmul.f32 %v1551, %v1276
    %v1725 = vmul.f32 %v1556, %v1277
    %v1726 = vmul.f32 %v1556, %v1278
    %v1727 = vmul.f32 %v1556, %v1279
    %v1728 = vmul.f32 %v1556, %v1280
    %v1729 = vmul.f32 %v1556, %v1281
    %v1730 = vmul.f32 %v1556, %v1282
    %v1731 = vmul.f32 %v1556, %v1283
    %v1732 = vmul.f32 %v1556, %v1284
    %v1733 = vmul.f32 %v1561, %v1285
    %v1734 = vmul.f32 %v1561, %v1286
    %v1735 = vmul.f32 %v1561, %v1287
    %v1736 = vmul.f32 %v1561, %v1288
    %v1737 = vmul.f32 %v1561, %v1289
    %v1738 = vmul.f32 %v1561, %v1290
    %v1739 = vmul.f32 %v1561, %v1291
    %v1740 = vmul.f32 %v1561, %v1292
    %v1741 = vmul.f32 %v1566, %v1293
    %v1742 = vmul.f32 %v1566, %v1294
    %v1743 = vmul.f32 %v1566, %v1295
    %v1744 = vmul.f32 %v1566, %v1296
    %v1745 = vmul.f32 %v1566, %v1297
    %v1746 = vmul.f32 %v1566, %v1298
    %v1747 = vmul.f32 %v1566, %v1299
    %v1748 = vmul.f32 %v1566, %v1300
    %v1749 = vmul.f32 %v1571, %v1301
    %v1750 = vmul.f32 %v1571, %v1302
    %v1751 = vmul.f32 %v1571, %v1303
    %v1752 = vmul.f32 %v1571, %v1304
    %v1753 = vmul.f32 %v1571, %v1305
    %v1754 = vmul.f32 %v1571, %v1306
    %v1755 = vmul.f32 %v1571, %v1307
    %v1756 = vmul.f32 %v1571, %v1308
    %v1757 = vmul.f32 %v1576, %v1309
    %v1758 = vmul.f32 %v1576, %v1310
    %v1759 = vmul.f32 %v1576, %v1311
    %v1760 = vmul.f32 %v1576, %v1312
    %v1761 = vmul.f32 %v1576, %v1313
    %v1762 = vmul.f32 %v1576, %v1314
    %v1763 = vmul.f32 %v1576, %v1315
    %v1764 = vmul.f32 %v1576, %v1316
    %v1765 = vmul.f32 %v1581, %v1317
    %v1766 = vmul.f32 %v1581, %v1318
    %v1767 = vmul.f32 %v1581, %v1319
    %v1768 = vmul.f32 %v1581, %v1320
    %v1769 = vmul.f32 %v1581, %v1321
    %v1770 = vmul.f32 %v1581, %v1322
    %v1771 = vmul.f32 %v1581, %v1323
    %v1772 = vmul.f32 %v1581, %v1324
    %v1773 = vmul.f32 %v1586, %v1325
    %v1774 = vmul.f32 %v1586, %v1326
    %v1775 = vmul.f32 %v1586, %v1327
    %v1776 = vmul.f32 %v1586, %v1328
    %v1777 = vmul.f32 %v1586, %v1329
    %v1778 = vmul.f32 %v1586, %v1330
    %v1779 = vmul.f32 %v1586, %v1331
    %v1780 = vmul.f32 %v1586, %v1332
    %v1781 = vmul.f32 %v1591, %v1333
    %v1782 = vmul.f32 %v1591, %v1334
    %v1783 = vmul.f32 %v1591, %v1335
    %v1784 = vmul.f32 %v1591, %v1336
    %v1785 = vmul.f32 %v1591, %v1337
    %v1786 = vmul.f32 %v1591, %v1338
    %v1787 = vmul.f32 %v1591, %v1339
    %v1788 = vmul.f32 %v1591, %v1340
    %v1789 = vmul.f32 %v1596, %v1341
    %v1790 = vmul.f32 %v1596, %v1342
    %v1791 = vmul.f32 %v1596, %v1343
    %v1792 = vmul.f32 %v1596, %v1344
    %v1793 = vmul.f32 %v1596, %v1345
    %v1794 = vmul.f32 %v1596, %v1346
    %v1795 = vmul.f32 %v1596, %v1347
    %v1796 = vmul.f32 %v1596, %v1348
    %v1797 = vmul.f32 %v1601, %v1349
    %v1798 = vmul.f32 %v1601, %v1350
    %v1799 = vmul.f32 %v1601, %v1351
    %v1800 = vmul.f32 %v1601, %v1352
    %v1801 = vmul.f32 %v1601, %v1353
    %v1802 = vmul.f32 %v1601, %v1354
    %v1803 = vmul.f32 %v1601, %v1355
    %v1804 = vmul.f32 %v1601, %v1356
    %v1805 = vmul.f32 %v1606, %v1357
    %v1806 = vmul.f32 %v1606, %v1358
    %v1807 = vmul.f32 %v1606, %v1359
    %v1808 = vmul.f32 %v1606, %v1360
    %v1809 = vmul.f32 %v1606, %v1361
    %v1810 = vmul.f32 %v1606, %v1362
    %v1811 = vmul.f32 %v1606, %v1363
    %v1812 = vmul.f32 %v1606, %v1364
    %v1813 = vmul.f32 %v1611, %v1365
    %v1814 = vmul.f32 %v1611, %v1366
    %v1815 = vmul.f32 %v1611, %v1367
    %v1816 = vmul.f32 %v1611, %v1368
    %v1817 = vmul.f32 %v1611, %v1369
    %v1818 = vmul.f32 %v1611, %v1370
    %v1819 = vmul.f32 %v1611, %v1371
    %v1820 = vmul.f32 %v1611, %v1372
    %v1821 = vmul.f32 %v1616, %v1373
    %v1822 = vmul.f32 %v1616, %v1374
    %v1823 = vmul.f32 %v1616, %v1375
    %v1824 = vmul.f32 %v1616, %v1376
    %v1825 = vmul.f32 %v1616, %v1377
    %v1826 = vmul.f32 %v1616, %v1378
    %v1827 = vmul.f32 %v1616, %v1379
    %v1828 = vmul.f32 %v1616, %v1380
    %v1829 = vmul.f32 %v1621, %v1381
    %v1830 = vmul.f32 %v1621, %v1382
    %v1831 = vmul.f32 %v1621, %v1383
    %v1832 = vmul.f32 %v1621, %v1384
    %v1833 = vmul.f32 %v1621, %v1385
    %v1834 = vmul.f32 %v1621, %v1386
    %v1835 = vmul.f32 %v1621, %v1387
    %v1836 = vmul.f32 %v1621, %v1388
    %v1837 = vmul.f32 %v1626, %v1389
    %v1838 = vmul.f32 %v1626, %v1390
    %v1839 = vmul.f32 %v1626, %v1391
    %v1840 = vmul.f32 %v1626, %v1392
    %v1841 = vmul.f32 %v1626, %v1393
    %v1842 = vmul.f32 %v1626, %v1394
    %v1843 = vmul.f32 %v1626, %v1395
    %v1844 = vmul.f32 %v1626, %v1396
    %v1845 = vmul.f32 %v1631, %v1397
    %v1846 = vmul.f32 %v1631, %v1398
    %v1847 = vmul.f32 %v1631, %v1399
    %v1848 = vmul.f32 %v1631, %v1400
    %v1849 = vmul.f32 %v1631, %v1401
    %v1850 = vmul.f32 %v1631, %v1402
    %v1851 = vmul.f32 %v1631, %v1403
    %v1852 = vmul.f32 %v1631, %v1404
    %v1853 = vmul.f32 %v1636, %v1405
    %v1854 = vmul.f32 %v1636, %v1406
    %v1855 = vmul.f32 %v1636, %v1407
    %v1856 = vmul.f32 %v1636, %v1408
    %v1857 = vmul.f32 %v1636, %v1409
    %v1858 = vmul.f32 %v1636, %v1410
    %v1859 = vmul.f32 %v1636, %v1411
    %v1860 = vmul.f32 %v1636, %v1412
    %v1861 = vmul.f32 %v1641, %v1413
    %v1862 = vmul.f32 %v1641, %v1414
    %v1863 = vmul.f32 %v1641, %v1415
    %v1864 = vmul.f32 %v1641, %v1416
    %v1865 = vmul.f32 %v1641, %v1417
    %v1866 = vmul.f32 %v1641, %v1418
    %v1867 = vmul.f32 %v1641, %v1419
    %v1868 = vmul.f32 %v1641, %v1420
    %v1869 = vmul.f32 %v1646, %v1421
    %v1870 = vmul.f32 %v1646, %v1422
    %v1871 = vmul.f32 %v1646, %v1423
    %v1872 = vmul.f32 %v1646, %v1424
    %v1873 = vmul.f32 %v1646, %v1425
    %v1874 = vmul.f32 %v1646, %v1426
    %v1875 = vmul.f32 %v1646, %v1427
    %v1876 = vmul.f32 %v1646, %v1428
    %v1877 = vmul.f32 %v1651, %v1429
    %v1878 = vmul.f32 %v1651, %v1430
    %v1879 = vmul.f32 %v1651, %v1431
    %v1880 = vmul.f32 %v1651, %v1432
    %v1881 = vmul.f32 %v1651, %v1433
    %v1882 = vmul.f32 %v1651, %v1434
    %v1883 = vmul.f32 %v1651, %v1435
    %v1884 = vmul.f32 %v1651, %v1436
    %v1885 = vmul.f32 %v1656, %v1437
    %v1886 = vmul.f32 %v1656, %v1438
    %v1887 = vmul.f32 %v1656, %v1439
    %v1888 = vmul.f32 %v1656, %v1440
    %v1889 = vmul.f32 %v1656, %v1441
    %v1890 = vmul.f32 %v1656, %v1442
    %v1891 = vmul.f32 %v1656, %v1443
    %v1892 = vmul.f32 %v1656, %v1444
    %v1893 = vmul.f32 %v1661, %v1445
    %v1894 = vmul.f32 %v1661, %v1446
    %v1895 = vmul.f32 %v1661, %v1447
    %v1896 = vmul.f32 %v1661, %v1448
    %v1897 = vmul.f32 %v1661, %v1449
    %v1898 = vmul.f32 %v1661, %v1450
    %v1899 = vmul.f32 %v1661, %v1451
    %v1900 = vmul.f32 %v1661, %v1452
    %v1901 = vmul.f32 %v1666, %v1453
    %v1902 = vmul.f32 %v1666, %v1454
    %v1903 = vmul.f32 %v1666, %v1455
    %v1904 = vmul.f32 %v1666, %v1456
    %v1905 = vmul.f32 %v1666, %v1457
    %v1906 = vmul.f32 %v1666, %v1458
    %v1907 = vmul.f32 %v1666, %v1459
    %v1908 = vmul.f32 %v1666, %v1460
    %v1909 = vmul.f32 %v1671, %v1461
    %v1910 = vmul.f32 %v1671, %v1462
    %v1911 = vmul.f32 %v1671, %v1463
    %v1912 = vmul.f32 %v1671, %v1464
    %v1913 = vmul.f32 %v1671, %v1465
    %v1914 = vmul.f32 %v1671, %v1466
    %v1915 = vmul.f32 %v1671, %v1467
    %v1916 = vmul.f32 %v1671, %v1468
    %v1917 = vmul.f32 %v1676, %v1469
    %v1918 = vmul.f32 %v1676, %v1470
    %v1919 = vmul.f32 %v1676, %v1471
    %v1920 = vmul.f32 %v1676, %v1472
    %v1921 = vmul.f32 %v1676, %v1473
    %v1922 = vmul.f32 %v1676, %v1474
    %v1923 = vmul.f32 %v1676, %v1475
    %v1924 = vmul.f32 %v1676, %v1476
    %v1925 = vmul.f32 %v1681, %v1477
    %v1926 = vmul.f32 %v1681, %v1478
    %v1927 = vmul.f32 %v1681, %v1479
    %v1928 = vmul.f32 %v1681, %v1480
    %v1929 = vmul.f32 %v1681, %v1481
    %v1930 = vmul.f32 %v1681, %v1482
    %v1931 = vmul.f32 %v1681, %v1483
    %v1932 = vmul.f32 %v1681, %v1484
    %v1933 = vmul.f32 %v1686, %v1485
    %v1934 = vmul.f32 %v1686, %v1486
    %v1935 = vmul.f32 %v1686, %v1487
    %v1936 = vmul.f32 %v1686, %v1488
    %v1937 = vmul.f32 %v1686, %v1489
    %v1938 = vmul.f32 %v1686, %v1490
    %v1939 = vmul.f32 %v1686, %v1491
    %v1940 = vmul.f32 %v1686, %v1492
    %v1941 = vmul.f32 %v1691, %v1493
    %v1942 = vmul.f32 %v1691, %v1494
    %v1943 = vmul.f32 %v1691, %v1495
    %v1944 = vmul.f32 %v1691, %v1496
    %v1945 = vmul.f32 %v1691, %v1497
    %v1946 = vmul.f32 %v1691, %v1498
    %v1947 = vmul.f32 %v1691, %v1499
    %v1948 = vmul.f32 %v1691, %v1500
    %1949 = vst [vmem:[#allocation5] sm:$0xff] %v1693
    %1950 = vst [vmem:[#allocation5 + $0x8] sm:$0xff] %v1694
    %1951 = vst [vmem:[#allocation5 + $0x10] sm:$0xff] %v1695
    %1952 = vst [vmem:[#allocation5 + $0x18] sm:$0xff] %v1696
    %1953 = vst [vmem:[#allocation5 + $0x20] sm:$0xff] %v1697
    %1954 = vst [vmem:[#allocation5 + $0x28] sm:$0xff] %v1698
    %1955 = vst [vmem:[#allocation5 + $0x30] sm:$0xff] %v1699
    %1956 = vst [vmem:[#allocation5 + $0x38] sm:$0xff] %v1700
    %1957 = vst [vmem:[#allocation5 + $0x40] sm:$0xff] %v1701
    %1958 = vst [vmem:[#allocation5 + $0x48] sm:$0xff] %v1702
    %1959 = vst [vmem:[#allocation5 + $0x50] sm:$0xff] %v1703
    %1960 = vst [vmem:[#allocation5 + $0x58] sm:$0xff] %v1704
    %1961 = vst [vmem:[#allocation5 + $0x60] sm:$0xff] %v1705
    %1962 = vst [vmem:[#allocation5 + $0x68] sm:$0xff] %v1706
    %1963 = vst [vmem:[#allocation5 + $0x70] sm:$0xff] %v1707
    %1964 = vst [vmem:[#allocation5 + $0x78] sm:$0xff] %v1708
    %1965 = vst [vmem:[#allocation5 + $0x80] sm:$0xff] %v1709
    %1966 = vst [vmem:[#allocation5 + $0x88] sm:$0xff] %v1710
    %1967 = vst [vmem:[#allocation5 + $0x90] sm:$0xff] %v1711
    %1968 = vst [vmem:[#allocation5 + $0x98] sm:$0xff] %v1712
    %1969 = vst [vmem:[#allocation5 + $0xa0] sm:$0xff] %v1713
    %1970 = vst [vmem:[#allocation5 + $0xa8] sm:$0xff] %v1714
    %1971 = vst [vmem:[#allocation5 + $0xb0] sm:$0xff] %v1715
    %1972 = vst [vmem:[#allocation5 + $0xb8] sm:$0xff] %v1716
    %1973 = vst [vmem:[#allocation5 + $0xc0] sm:$0xff] %v1717
    %1974 = vst [vmem:[#allocation5 + $0xc8] sm:$0xff] %v1718
    %1975 = vst [vmem:[#allocation5 + $0xd0] sm:$0xff] %v1719
    %1976 = vst [vmem:[#allocation5 + $0xd8] sm:$0xff] %v1720
    %1977 = vst [vmem:[#allocation5 + $0xe0] sm:$0xff] %v1721
    %1978 = vst [vmem:[#allocation5 + $0xe8] sm:$0xff] %v1722
    %1979 = vst [vmem:[#allocation5 + $0xf0] sm:$0xff] %v1723
    %1980 = vst [vmem:[#allocation5 + $0xf8] sm:$0xff] %v1724
    %1981 = vst [vmem:[#allocation5 + $0x100] sm:$0xff] %v1725
    %1982 = vst [vmem:[#allocation5 + $0x108] sm:$0xff] %v1726
    %1983 = vst [vmem:[#allocation5 + $0x110] sm:$0xff] %v1727
    %1984 = vst [vmem:[#allocation5 + $0x118] sm:$0xff] %v1728
    %1985 = vst [vmem:[#allocation5 + $0x120] sm:$0xff] %v1729
    %1986 = vst [vmem:[#allocation5 + $0x128] sm:$0xff] %v1730
    %1987 = vst [vmem:[#allocation5 + $0x130] sm:$0xff] %v1731
    %1988 = vst [vmem:[#allocation5 + $0x138] sm:$0xff] %v1732
    %1989 = vst [vmem:[#allocation5 + $0x140] sm:$0xff] %v1733
    %1990 = vst [vmem:[#allocation5 + $0x148] sm:$0xff] %v1734
    %1991 = vst [vmem:[#allocation5 + $0x150] sm:$0xff] %v1735
    %1992 = vst [vmem:[#allocation5 + $0x158] sm:$0xff] %v1736
    %1993 = vst [vmem:[#allocation5 + $0x160] sm:$0xff] %v1737
    %1994 = vst [vmem:[#allocation5 + $0x168] sm:$0xff] %v1738
    %1995 = vst [vmem:[#allocation5 + $0x170] sm:$0xff] %v1739
    %1996 = vst [vmem:[#allocation5 + $0x178] sm:$0xff] %v1740
    %1997 = vst [vmem:[#allocation5 + $0x180] sm:$0xff] %v1741
    %1998 = vst [vmem:[#allocation5 + $0x188] sm:$0xff] %v1742
    %1999 = vst [vmem:[#allocation5 + $0x190] sm:$0xff] %v1743
    %2000 = vst [vmem:[#allocation5 + $0x198] sm:$0xff] %v1744
    %2001 = vst [vmem:[#allocation5 + $0x1a0] sm:$0xff] %v1745
    %2002 = vst [vmem:[#allocation5 + $0x1a8] sm:$0xff] %v1746
    %2003 = vst [vmem:[#allocation5 + $0x1b0] sm:$0xff] %v1747
    %2004 = vst [vmem:[#allocation5 + $0x1b8] sm:$0xff] %v1748
    %2005 = vst [vmem:[#allocation5 + $0x1c0] sm:$0xff] %v1749
    %2006 = vst [vmem:[#allocation5 + $0x1c8] sm:$0xff] %v1750
    %2007 = vst [vmem:[#allocation5 + $0x1d0] sm:$0xff] %v1751
    %2008 = vst [vmem:[#allocation5 + $0x1d8] sm:$0xff] %v1752
    %2009 = vst [vmem:[#allocation5 + $0x1e0] sm:$0xff] %v1753
    %2010 = vst [vmem:[#allocation5 + $0x1e8] sm:$0xff] %v1754
    %2011 = vst [vmem:[#allocation5 + $0x1f0] sm:$0xff] %v1755
    %2012 = vst [vmem:[#allocation5 + $0x1f8] sm:$0xff] %v1756
    %2013 = vst [vmem:[#allocation5 + $0x200] sm:$0xff] %v1757
    %2014 = vst [vmem:[#allocation5 + $0x208] sm:$0xff] %v1758
    %2015 = vst [vmem:[#allocation5 + $0x210] sm:$0xff] %v1759
    %2016 = vst [vmem:[#allocation5 + $0x218] sm:$0xff] %v1760
    %2017 = vst [vmem:[#allocation5 + $0x220] sm:$0xff] %v1761
    %2018 = vst [vmem:[#allocation5 + $0x228] sm:$0xff] %v1762
    %2019 = vst [vmem:[#allocation5 + $0x230] sm:$0xff] %v1763
    %2020 = vst [vmem:[#allocation5 + $0x238] sm:$0xff] %v1764
    %2021 = vst [vmem:[#allocation5 + $0x240] sm:$0xff] %v1765
    %2022 = vst [vmem:[#allocation5 + $0x248] sm:$0xff] %v1766
    %2023 = vst [vmem:[#allocation5 + $0x250] sm:$0xff] %v1767
    %2024 = vst [vmem:[#allocation5 + $0x258] sm:$0xff] %v1768
    %2025 = vst [vmem:[#allocation5 + $0x260] sm:$0xff] %v1769
    %2026 = vst [vmem:[#allocation5 + $0x268] sm:$0xff] %v1770
    %2027 = vst [vmem:[#allocation5 + $0x270] sm:$0xff] %v1771
    %2028 = vst [vmem:[#allocation5 + $0x278] sm:$0xff] %v1772
    %2029 = vst [vmem:[#allocation5 + $0x280] sm:$0xff] %v1773
    %2030 = vst [vmem:[#allocation5 + $0x288] sm:$0xff] %v1774
    %2031 = vst [vmem:[#allocation5 + $0x290] sm:$0xff] %v1775
    %2032 = vst [vmem:[#allocation5 + $0x298] sm:$0xff] %v1776
    %2033 = vst [vmem:[#allocation5 + $0x2a0] sm:$0xff] %v1777
    %2034 = vst [vmem:[#allocation5 + $0x2a8] sm:$0xff] %v1778
    %2035 = vst [vmem:[#allocation5 + $0x2b0] sm:$0xff] %v1779
    %2036 = vst [vmem:[#allocation5 + $0x2b8] sm:$0xff] %v1780
    %2037 = vst [vmem:[#allocation5 + $0x2c0] sm:$0xff] %v1781
    %2038 = vst [vmem:[#allocation5 + $0x2c8] sm:$0xff] %v1782
    %2039 = vst [vmem:[#allocation5 + $0x2d0] sm:$0xff] %v1783
    %2040 = vst [vmem:[#allocation5 + $0x2d8] sm:$0xff] %v1784
    %2041 = vst [vmem:[#allocation5 + $0x2e0] sm:$0xff] %v1785
    %2042 = vst [vmem:[#allocation5 + $0x2e8] sm:$0xff] %v1786
    %2043 = vst [vmem:[#allocation5 + $0x2f0] sm:$0xff] %v1787
    %2044 = vst [vmem:[#allocation5 + $0x2f8] sm:$0xff] %v1788
    %2045 = vst [vmem:[#allocation5 + $0x300] sm:$0xff] %v1789
    %2046 = vst [vmem:[#allocation5 + $0x308] sm:$0xff] %v1790
    %2047 = vst [vmem:[#allocation5 + $0x310] sm:$0xff] %v1791
    %2048 = vst [vmem:[#allocation5 + $0x318] sm:$0xff] %v1792
    %2049 = vst [vmem:[#allocation5 + $0x320] sm:$0xff] %v1793
    %2050 = vst [vmem:[#allocation5 + $0x328] sm:$0xff] %v1794
    %2051 = vst [vmem:[#allocation5 + $0x330] sm:$0xff] %v1795
    %2052 = vst [vmem:[#allocation5 + $0x338] sm:$0xff] %v1796
    %2053 = vst [vmem:[#allocation5 + $0x340] sm:$0xff] %v1797
    %2054 = vst [vmem:[#allocation5 + $0x348] sm:$0xff] %v1798
    %2055 = vst [vmem:[#allocation5 + $0x350] sm:$0xff] %v1799
    %2056 = vst [vmem:[#allocation5 + $0x358] sm:$0xff] %v1800
    %2057 = vst [vmem:[#allocation5 + $0x360] sm:$0xff] %v1801
    %2058 = vst [vmem:[#allocation5 + $0x368] sm:$0xff] %v1802
    %2059 = vst [vmem:[#allocation5 + $0x370] sm:$0xff] %v1803
    %2060 = vst [vmem:[#allocation5 + $0x378] sm:$0xff] %v1804
    %2061 = vst [vmem:[#allocation5 + $0x380] sm:$0xff] %v1805
    %2062 = vst [vmem:[#allocation5 + $0x388] sm:$0xff] %v1806
    %2063 = vst [vmem:[#allocation5 + $0x390] sm:$0xff] %v1807
    %2064 = vst [vmem:[#allocation5 + $0x398] sm:$0xff] %v1808
    %2065 = vst [vmem:[#allocation5 + $0x3a0] sm:$0xff] %v1809
    %2066 = vst [vmem:[#allocation5 + $0x3a8] sm:$0xff] %v1810
    %2067 = vst [vmem:[#allocation5 + $0x3b0] sm:$0xff] %v1811
    %2068 = vst [vmem:[#allocation5 + $0x3b8] sm:$0xff] %v1812
    %2069 = vst [vmem:[#allocation5 + $0x3c0] sm:$0xff] %v1813
    %2070 = vst [vmem:[#allocation5 + $0x3c8] sm:$0xff] %v1814
    %2071 = vst [vmem:[#allocation5 + $0x3d0] sm:$0xff] %v1815
    %2072 = vst [vmem:[#allocation5 + $0x3d8] sm:$0xff] %v1816
    %2073 = vst [vmem:[#allocation5 + $0x3e0] sm:$0xff] %v1817
    %2074 = vst [vmem:[#allocation5 + $0x3e8] sm:$0xff] %v1818
    %2075 = vst [vmem:[#allocation5 + $0x3f0] sm:$0xff] %v1819
    %2076 = vst [vmem:[#allocation5 + $0x3f8] sm:$0xff] %v1820
    %2077 = vst [vmem:[#allocation5 + $0x400] sm:$0xff] %v1821
    %2078 = vst [vmem:[#allocation5 + $0x408] sm:$0xff] %v1822
    %2079 = vst [vmem:[#allocation5 + $0x410] sm:$0xff] %v1823
    %2080 = vst [vmem:[#allocation5 + $0x418] sm:$0xff] %v1824
    %2081 = vst [vmem:[#allocation5 + $0x420] sm:$0xff] %v1825
    %2082 = vst [vmem:[#allocation5 + $0x428] sm:$0xff] %v1826
    %2083 = vst [vmem:[#allocation5 + $0x430] sm:$0xff] %v1827
    %2084 = vst [vmem:[#allocation5 + $0x438] sm:$0xff] %v1828
    %2085 = vst [vmem:[#allocation5 + $0x440] sm:$0xff] %v1829
    %2086 = vst [vmem:[#allocation5 + $0x448] sm:$0xff] %v1830
    %2087 = vst [vmem:[#allocation5 + $0x450] sm:$0xff] %v1831
    %2088 = vst [vmem:[#allocation5 + $0x458] sm:$0xff] %v1832
    %2089 = vst [vmem:[#allocation5 + $0x460] sm:$0xff] %v1833
    %2090 = vst [vmem:[#allocation5 + $0x468] sm:$0xff] %v1834
    %2091 = vst [vmem:[#allocation5 + $0x470] sm:$0xff] %v1835
    %2092 = vst [vmem:[#allocation5 + $0x478] sm:$0xff] %v1836
    %2093 = vst [vmem:[#allocation5 + $0x480] sm:$0xff] %v1837
    %2094 = vst [vmem:[#allocation5 + $0x488] sm:$0xff] %v1838
    %2095 = vst [vmem:[#allocation5 + $0x490] sm:$0xff] %v1839
    %2096 = vst [vmem:[#allocation5 + $0x498] sm:$0xff] %v1840
    %2097 = vst [vmem:[#allocation5 + $0x4a0] sm:$0xff] %v1841
    %2098 = vst [vmem:[#allocation5 + $0x4a8] sm:$0xff] %v1842
    %2099 = vst [vmem:[#allocation5 + $0x4b0] sm:$0xff] %v1843
    %2100 = vst [vmem:[#allocation5 + $0x4b8] sm:$0xff] %v1844
    %2101 = vst [vmem:[#allocation5 + $0x4c0] sm:$0xff] %v1845
    %2102 = vst [vmem:[#allocation5 + $0x4c8] sm:$0xff] %v1846
    %2103 = vst [vmem:[#allocation5 + $0x4d0] sm:$0xff] %v1847
    %2104 = vst [vmem:[#allocation5 + $0x4d8] sm:$0xff] %v1848
    %2105 = vst [vmem:[#allocation5 + $0x4e0] sm:$0xff] %v1849
    %2106 = vst [vmem:[#allocation5 + $0x4e8] sm:$0xff] %v1850
    %2107 = vst [vmem:[#allocation5 + $0x4f0] sm:$0xff] %v1851
    %2108 = vst [vmem:[#allocation5 + $0x4f8] sm:$0xff] %v1852
    %2109 = vst [vmem:[#allocation5 + $0x500] sm:$0xff] %v1853
    %2110 = vst [vmem:[#allocation5 + $0x508] sm:$0xff] %v1854
    %2111 = vst [vmem:[#allocation5 + $0x510] sm:$0xff] %v1855
    %2112 = vst [vmem:[#allocation5 + $0x518] sm:$0xff] %v1856
    %2113 = vst [vmem:[#allocation5 + $0x520] sm:$0xff] %v1857
    %2114 = vst [vmem:[#allocation5 + $0x528] sm:$0xff] %v1858
    %2115 = vst [vmem:[#allocation5 + $0x530] sm:$0xff] %v1859
    %2116 = vst [vmem:[#allocation5 + $0x538] sm:$0xff] %v1860
    %2117 = vst [vmem:[#allocation5 + $0x540] sm:$0xff] %v1861
    %2118 = vst [vmem:[#allocation5 + $0x548] sm:$0xff] %v1862
    %2119 = vst [vmem:[#allocation5 + $0x550] sm:$0xff] %v1863
    %2120 = vst [vmem:[#allocation5 + $0x558] sm:$0xff] %v1864
    %2121 = vst [vmem:[#allocation5 + $0x560] sm:$0xff] %v1865
    %2122 = vst [vmem:[#allocation5 + $0x568] sm:$0xff] %v1866
    %2123 = vst [vmem:[#allocation5 + $0x570] sm:$0xff] %v1867
    %2124 = vst [vmem:[#allocation5 + $0x578] sm:$0xff] %v1868
    %2125 = vst [vmem:[#allocation5 + $0x580] sm:$0xff] %v1869
    %2126 = vst [vmem:[#allocation5 + $0x588] sm:$0xff] %v1870
    %2127 = vst [vmem:[#allocation5 + $0x590] sm:$0xff] %v1871
    %2128 = vst [vmem:[#allocation5 + $0x598] sm:$0xff] %v1872
    %2129 = vst [vmem:[#allocation5 + $0x5a0] sm:$0xff] %v1873
    %2130 = vst [vmem:[#allocation5 + $0x5a8] sm:$0xff] %v1874
    %2131 = vst [vmem:[#allocation5 + $0x5b0] sm:$0xff] %v1875
    %2132 = vst [vmem:[#allocation5 + $0x5b8] sm:$0xff] %v1876
    %2133 = vst [vmem:[#allocation5 + $0x5c0] sm:$0xff] %v1877
    %2134 = vst [vmem:[#allocation5 + $0x5c8] sm:$0xff] %v1878
    %2135 = vst [vmem:[#allocation5 + $0x5d0] sm:$0xff] %v1879
    %2136 = vst [vmem:[#allocation5 + $0x5d8] sm:$0xff] %v1880
    %2137 = vst [vmem:[#allocation5 + $0x5e0] sm:$0xff] %v1881
    %2138 = vst [vmem:[#allocation5 + $0x5e8] sm:$0xff] %v1882
    %2139 = vst [vmem:[#allocation5 + $0x5f0] sm:$0xff] %v1883
    %2140 = vst [vmem:[#allocation5 + $0x5f8] sm:$0xff] %v1884
    %2141 = vst [vmem:[#allocation5 + $0x600] sm:$0xff] %v1885
    %2142 = vst [vmem:[#allocation5 + $0x608] sm:$0xff] %v1886
    %2143 = vst [vmem:[#allocation5 + $0x610] sm:$0xff] %v1887
    %2144 = vst [vmem:[#allocation5 + $0x618] sm:$0xff] %v1888
    %2145 = vst [vmem:[#allocation5 + $0x620] sm:$0xff] %v1889
    %2146 = vst [vmem:[#allocation5 + $0x628] sm:$0xff] %v1890
    %2147 = vst [vmem:[#allocation5 + $0x630] sm:$0xff] %v1891
    %2148 = vst [vmem:[#allocation5 + $0x638] sm:$0xff] %v1892
    %2149 = vst [vmem:[#allocation5 + $0x640] sm:$0xff] %v1893
    %2150 = vst [vmem:[#allocation5 + $0x648] sm:$0xff] %v1894
    %2151 = vst [vmem:[#allocation5 + $0x650] sm:$0xff] %v1895
    %2152 = vst [vmem:[#allocation5 + $0x658] sm:$0xff] %v1896
    %2153 = vst [vmem:[#allocation5 + $0x660] sm:$0xff] %v1897
    %2154 = vst [vmem:[#allocation5 + $0x668] sm:$0xff] %v1898
    %2155 = vst [vmem:[#allocation5 + $0x670] sm:$0xff] %v1899
    %2156 = vst [vmem:[#allocation5 + $0x678] sm:$0xff] %v1900
    %2157 = vst [vmem:[#allocation5 + $0x680] sm:$0xff] %v1901
    %2158 = vst [vmem:[#allocation5 + $0x688] sm:$0xff] %v1902
    %2159 = vst [vmem:[#allocation5 + $0x690] sm:$0xff] %v1903
    %2160 = vst [vmem:[#allocation5 + $0x698] sm:$0xff] %v1904
    %2161 = vst [vmem:[#allocation5 + $0x6a0] sm:$0xff] %v1905
    %2162 = vst [vmem:[#allocation5 + $0x6a8] sm:$0xff] %v1906
    %2163 = vst [vmem:[#allocation5 + $0x6b0] sm:$0xff] %v1907
    %2164 = vst [vmem:[#allocation5 + $0x6b8] sm:$0xff] %v1908
    %2165 = vst [vmem:[#allocation5 + $0x6c0] sm:$0xff] %v1909
    %2166 = vst [vmem:[#allocation5 + $0x6c8] sm:$0xff] %v1910
    %2167 = vst [vmem:[#allocation5 + $0x6d0] sm:$0xff] %v1911
    %2168 = vst [vmem:[#allocation5 + $0x6d8] sm:$0xff] %v1912
    %2169 = vst [vmem:[#allocation5 + $0x6e0] sm:$0xff] %v1913
    %2170 = vst [vmem:[#allocation5 + $0x6e8] sm:$0xff] %v1914
    %2171 = vst [vmem:[#allocation5 + $0x6f0] sm:$0xff] %v1915
    %2172 = vst [vmem:[#allocation5 + $0x6f8] sm:$0xff] %v1916
    %2173 = vst [vmem:[#allocation5 + $0x700] sm:$0xff] %v1917
    %2174 = vst [vmem:[#allocation5 + $0x708] sm:$0xff] %v1918
    %2175 = vst [vmem:[#allocation5 + $0x710] sm:$0xff] %v1919
    %2176 = vst [vmem:[#allocation5 + $0x718] sm:$0xff] %v1920
    %2177 = vst [vmem:[#allocation5 + $0x720] sm:$0xff] %v1921
    %2178 = vst [vmem:[#allocation5 + $0x728] sm:$0xff] %v1922
    %2179 = vst [vmem:[#allocation5 + $0x730] sm:$0xff] %v1923
    %2180 = vst [vmem:[#allocation5 + $0x738] sm:$0xff] %v1924
    %2181 = vst [vmem:[#allocation5 + $0x740] sm:$0xff] %v1925
    %2182 = vst [vmem:[#allocation5 + $0x748] sm:$0xff] %v1926
    %2183 = vst [vmem:[#allocation5 + $0x750] sm:$0xff] %v1927
    %2184 = vst [vmem:[#allocation5 + $0x758] sm:$0xff] %v1928
    %2185 = vst [vmem:[#allocation5 + $0x760] sm:$0xff] %v1929
    %2186 = vst [vmem:[#allocation5 + $0x768] sm:$0xff] %v1930
    %2187 = vst [vmem:[#allocation5 + $0x770] sm:$0xff] %v1931
    %2188 = vst [vmem:[#allocation5 + $0x778] sm:$0xff] %v1932
    %2189 = vst [vmem:[#allocation5 + $0x780] sm:$0xff] %v1933
    %2190 = vst [vmem:[#allocation5 + $0x788] sm:$0xff] %v1934
    %2191 = vst [vmem:[#allocation5 + $0x790] sm:$0xff] %v1935
    %2192 = vst [vmem:[#allocation5 + $0x798] sm:$0xff] %v1936
    %2193 = vst [vmem:[#allocation5 + $0x7a0] sm:$0xff] %v1937
    %2194 = vst [vmem:[#allocation5 + $0x7a8] sm:$0xff] %v1938
    %2195 = vst [vmem:[#allocation5 + $0x7b0] sm:$0xff] %v1939
    %2196 = vst [vmem:[#allocation5 + $0x7b8] sm:$0xff] %v1940
    %2197 = vst [vmem:[#allocation5 + $0x7c0] sm:$0xff] %v1941
    %2198 = vst [vmem:[#allocation5 + $0x7c8] sm:$0xff] %v1942
    %2199 = vst [vmem:[#allocation5 + $0x7d0] sm:$0xff] %v1943
    %2200 = vst [vmem:[#allocation5 + $0x7d8] sm:$0xff] %v1944
    %2201 = vst [vmem:[#allocation5 + $0x7e0] sm:$0xff] %v1945
    %2202 = vst [vmem:[#allocation5 + $0x7e8] sm:$0xff] %v1946
    %2203 = vst [vmem:[#allocation5 + $0x7f0] sm:$0xff] %v1947
    %2204 = vst [vmem:[#allocation5 + $0x7f8] sm:$0xff] %v1948
    // Predicated region
    $region18: #{tpu_custom_call.1} parent=1 // pred_check
      _
    $region19: #{tpu_custom_call.1} parent=1 // pred_check_branch
      %2206 = sbr.rel (0) target = $region21
    $region20: #{tpu_custom_call.1} parent=1 // pred_region
      %s2208 = ssub.s32 32768, 32768
      %2209 = vsyncadd [#allocation4], %s2208
      %s2210 = sshll.u32 [#allocation5], 4
      %s2211 = int_to_ptr.vmem [resolvable:$true] %s2210
      %2216 = dma.vmem_to_hbm [thread:$0]  %s2211, 32768, %s3, [#allocation4], 1024, 1024, 64
    $region21: #{tpu_custom_call.1} parent=1 // pred_fallthru
      _
    // Predicated region
    $region22: #{tpu_custom_call.1} parent=1 // pred_check
      _
    $region23: #{tpu_custom_call.1} parent=1 // pred_check_branch
      %2218 = sbr.rel (0) target = $region25
    $region24: #{tpu_custom_call.1} parent=1 // pred_region
      %2219 = dma.done [#allocation4], 32768
    $region25: #{tpu_custom_call.1} parent=1 // pred_fallthru
      _
    %2220 = vsyncpa [#allocation3], 1
    %2221 = vsyncpa [#allocation4], 1

</llo_original>
